<compile_context>
chip_gen: v6e
topology: v6e:2x2x1
jax: 0.10.0
libtpu: 0.0.40
codegen_flags: <defaults>
</compile_context>

<pallas_src>
import math

import jax
import jax.numpy as jnp
from jax import lax
from jax.experimental import pallas as pl
from jax.experimental.pallas import tpu as pltpu


# ----------------------------- model config --------------------------------
NTOKEN = 16
D_MODEL = 32
NHEAD = 4
HEAD_DIM = D_MODEL // NHEAD
D_HID = 64
SEQ_LEN = 8
BATCH = 2
LN_EPS = 1e-5
AUG_DIM = 40           # D_MODEL + 1 (bias column), padded to a multiple of 8
OUT_PAD = 128          # lane-dense decoder output width (>= NTOKEN)


def _layernorm(x, gamma, beta):
    # x: [N, D]; PyTorch LayerNorm: biased variance, eps=1e-5
    mu = jnp.mean(x, axis=-1, keepdims=True)
    xc = x - mu
    var = jnp.mean(xc * xc, axis=-1, keepdims=True)
    return xc * lax.rsqrt(var + LN_EPS) * gamma + beta


def _encoder_kernel(xa_ref, mask_ref, a_ref, wvo_ref, w1_ref, w2_ref,
                    wd_ref, vec_ref, out_ref):
    D, H, F = D_MODEL, NHEAD, D_HID

    xa = xa_ref[...]                     # [N, AUG_DIM]  (emb*sqrt(D)+PE | 1 | 0)
    x = xa[:, :D]                        # [N, D]
    mask = mask_ref[...]                 # [N, N] block-diag additive mask

    vec = vec_ref[...]                   # [8, 128] packed bias / LN slab
    bo, g1, be1 = vec[0, :D], vec[1, :D], vec[2, :D]
    b1 = vec[3, :F]
    b2 = vec[4, :D]
    bd = vec[5, :]                       # [OUT_PAD] fused decoder bias

    # ---- multi-head self-attention (Q/K folded into A_h, V/Wo fused) ------
    attn = None
    for h in range(H):                   # H=4, unrolled at trace time
        # scores: xa @ A_h @ xa^T  (scale + qkv biases already folded in)
        t = jnp.dot(xa, a_ref[h], preferred_element_type=jnp.float32)     # [N, DA]
        s = lax.dot_general(t, xa, (((1,), (1,)), ((), ())),
                            preferred_element_type=jnp.float32)           # [N, N]
        s = s + mask
        s = s - jnp.max(s, axis=-1, keepdims=True)
        p = jnp.exp(s)
        p = p * pl.reciprocal(jnp.sum(p, axis=-1, keepdims=True), approx=True)

        # value + per-head out-proj fused: p @ (xa @ (Wv_aug @ Wo_h))
        vo = jnp.dot(xa, wvo_ref[h], preferred_element_type=jnp.float32)  # [N, D]
        oh = jnp.dot(p, vo, preferred_element_type=jnp.float32)           # [N, D]
        attn = oh if attn is None else attn + oh
    attn = attn + bo

    y = _layernorm(x + attn, g1, be1)

    # ---- feed-forward ----
    h1 = jnp.dot(y, w1_ref[...], preferred_element_type=jnp.float32) + b1
    h1 = jnp.maximum(h1, 0.0)                                   # relu
    ff = jnp.dot(h1, w2_ref[...], preferred_element_type=jnp.float32) + b2

    # ---- LayerNorm2 (affine folded into decoder) + decoder ----------------
    z = y + ff
    mu = jnp.mean(z, axis=-1, keepdims=True)
    zc = z - mu
    var = jnp.mean(zc * zc, axis=-1, keepdims=True)
    zn = zc * lax.rsqrt(var + LN_EPS)
    # padded-to-128 fused decoder -> unmasked, lane-dense store
    out_ref[...] = jnp.dot(zn, wd_ref[...],
                           preferred_element_type=jnp.float32) + bd


@jax.jit
def transformer_forward(src, src_mask, params):
    """src: [S, B] int32 tokens; src_mask: [S, S] additive float mask.
    Returns logits [S, B, NTOKEN] (PyTorch layout)."""
    S, B = src.shape
    N = B * S

    # glue: embedding gather + sqrt(d_model) scale + PE, batch-major, flat.
    # TODO(synk): the integer embedding gather stays in plain XLA (no clean
    # small-table gather primitive inside the Pallas kernel at this size).
    emb = params["emb"][src] * math.sqrt(D_MODEL)                # [S, B, D]
    x = jnp.transpose(emb, (1, 0, 2)) + params["pe"][None, :S, :]
    x = x.reshape(N, D_MODEL).astype(jnp.float32)                # [B*S, D]

    # augmented activations: [x | 1 | zero-pad] so qkv biases ride the matmul
    xa = (jnp.zeros((N, AUG_DIM), jnp.float32)
          .at[:, :D_MODEL].set(x)
          .at[:, D_MODEL].set(1.0))

    # block-diagonal mask: batch b attends only within batch b (plus the
    # user-provided additive src_mask inside each diagonal block).
    bid = jnp.arange(N, dtype=jnp.int32) // S
    same_batch = bid[:, None] == bid[None, :]
    full_mask = jnp.where(same_batch,
                          jnp.tile(src_mask.astype(jnp.float32), (B, B)),
                          jnp.float32(-1e9))

    vspec = pl.BlockSpec(memory_space=pltpu.MemorySpace.VMEM)
    out = pl.pallas_call(
        _encoder_kernel,
        out_shape=jax.ShapeDtypeStruct((N, OUT_PAD), jnp.float32),
        in_specs=[vspec] * 8,
        out_specs=vspec,
    )(xa, full_mask, params["a_hm"], params["wvo_hm"],
      params["w1"], params["w2"], params["wd_fused"], params["vecs"])

    logits = out[:, :NTOKEN].reshape(B, S, NTOKEN)
    return jnp.transpose(logits, (1, 0, 2))                      # [S, B, NTOKEN]


def make_params(key):
    ks = jax.random.split(key, 8)
    u = lambda k, shp, r: jax.random.uniform(k, shp, jnp.float32, -r, r)
    D, H, E, F = D_MODEL, NHEAD, HEAD_DIM, D_HID
    scale = 1.0 / math.sqrt(E)

    # nn.Embedding(ntoken, d_model), uniform(-0.1, 0.1)
    emb = u(ks[0], (NTOKEN, D), 0.1)

    # attention in-proj / out-proj in x @ W layout
    wqkv = u(ks[1], (D, 3 * D), 1.0 / math.sqrt(D))
    bqkv = jnp.zeros((3 * D,), jnp.float32)      # PyTorch MHA: in_proj_bias = 0
    wo = u(ks[2], (D, D), 1.0 / math.sqrt(D))
    bo = jnp.zeros((D,), jnp.float32)            # out_proj.bias = 0

    def aug(w, b):                               # [D, E], [E] -> [AUG_DIM, E]
        a = jnp.zeros((AUG_DIM, w.shape[1]), jnp.float32)
        return a.at[:D, :].set(w).at[D, :].set(b)

    a_hm, wvo_hm = [], []
    wq, wk, wv = wqkv[:, :D], wqkv[:, D:2 * D], wqkv[:, 2 * D:]
    bq, bk, bv = bqkv[:D], bqkv[D:2 * D], bqkv[2 * D:]
    for h in range(H):
        sl = slice(h * E, (h + 1) * E)
        wq_a = aug(wq[:, sl], bq[sl])            # [DA, E]
        wk_a = aug(wk[:, sl], bk[sl])
        wv_a = aug(wv[:, sl], bv[sl])
        wo_h = wo[sl, :]                         # [E, D]
        a_hm.append(scale * (wq_a @ wk_a.T))     # [DA, DA]  (Q·K^T + scale folded)
        wvo_hm.append(wv_a @ wo_h)               # [DA, D]   (V proj + out proj fused)
    a_hm = jnp.stack(a_hm)                       # [H, DA, DA]
    wvo_hm = jnp.stack(wvo_hm)                   # [H, DA, D]

    # LayerNorms
    g1 = jnp.ones((D,), jnp.float32)
    be1 = jnp.zeros((D,), jnp.float32)
    g2 = jnp.ones((D,), jnp.float32)
    be2 = jnp.zeros((D,), jnp.float32)

    # FFN linear1 / linear2
    w1 = u(ks[3], (D, F), 1.0 / math.sqrt(D))
    b1 = u(ks[4], (F,), 1.0 / math.sqrt(D))
    w2 = u(ks[5], (F, D), 1.0 / math.sqrt(F))
    b2 = u(ks[6], (D,), 1.0 / math.sqrt(F))

    # decoder Linear(d_model, ntoken): weight uniform(-0.1,0.1), bias zero,
    # padded to 128 output lanes; LayerNorm2 affine folded in host-side.
    wd = u(ks[7], (D, NTOKEN), 0.1)
    bd = jnp.zeros((NTOKEN,), jnp.float32)
    wd_pad = jnp.zeros((D, OUT_PAD), jnp.float32).at[:, :NTOKEN].set(wd)
    bd_pad = jnp.zeros((OUT_PAD,), jnp.float32).at[:NTOKEN].set(bd)
    wd_fused = g2[:, None] * wd_pad
    bd_fused = be2 @ wd_pad + bd_pad

    # one [8, 128] slab holding every small vector parameter (single DMA)
    vecs = jnp.zeros((8, 128), jnp.float32)
    vecs = vecs.at[0, :D].set(bo)
    vecs = vecs.at[1, :D].set(g1)
    vecs = vecs.at[2, :D].set(be1)
    vecs = vecs.at[3, :F].set(b1)
    vecs = vecs.at[4, :D].set(b2)
    vecs = vecs.at[5, :].set(bd_fused)

    # sinusoidal positional encoding (tutorial PositionalEncoding)
    pos = jnp.arange(SEQ_LEN, dtype=jnp.float32)[:, None]
    div = jnp.exp(jnp.arange(0, D, 2, dtype=jnp.float32)
                  * (-math.log(10000.0) / D))
    pe = jnp.zeros((SEQ_LEN, D), jnp.float32)
    pe = pe.at[:, 0::2].set(jnp.sin(pos * div))
    pe = pe.at[:, 1::2].set(jnp.cos(pos * div))

    return dict(emb=emb, pe=pe, a_hm=a_hm, wvo_hm=wvo_hm,
                w1=w1, w2=w2, wd_fused=wd_fused, vecs=vecs)


if __name__ == "__main__":
    key = jax.random.PRNGKey(0)
    pkey, skey = jax.random.split(key)
    params = make_params(pkey)

    # src: [seq_len, batch] token ids; src_mask: causal additive mask [S, S]
    src = jax.random.randint(skey, (SEQ_LEN, BATCH), 0, NTOKEN, dtype=jnp.int32)
    causal = jnp.triu(jnp.ones((SEQ_LEN, SEQ_LEN), jnp.float32), k=1)
    src_mask = causal * (-1e9)

    out = transformer_forward(src, src_mask, params)
    out = jax.block_until_ready(out)
    assert out.shape == (SEQ_LEN, BATCH, NTOKEN), out.shape
    assert bool(jnp.all(jnp.isfinite(out)))
    print("KERNEL_OK")
</pallas_src>

<mosaic_0001>
module attributes {stable_mosaic.version = 11 : i64} {
  func.func @_encoder_kernel(%arg0: memref<16x40xf32, #tpu.memory_space<vmem>>, %arg1: memref<16x16xf32, #tpu.memory_space<vmem>>, %arg2: memref<4x40x40xf32, #tpu.memory_space<vmem>>, %arg3: memref<4x40x32xf32, #tpu.memory_space<vmem>>, %arg4: memref<32x64xf32, #tpu.memory_space<vmem>>, %arg5: memref<64x32xf32, #tpu.memory_space<vmem>>, %arg6: memref<32x128xf32, #tpu.memory_space<vmem>>, %arg7: memref<8x128xf32, #tpu.memory_space<vmem>>, %arg8: memref<16x128xf32, #tpu.memory_space<vmem>>) attributes {dimension_semantics = [], scalar_prefetch = 0 : i64, scratch_operands = 0 : i64, tpu.core_type = #tpu.core_type<tc>} {
    %c0 = arith.constant 0 : index
    %c0_0 = arith.constant 0 : index
    %0 = vector.load %arg0[%c0, %c0_0] : memref<16x40xf32, #tpu.memory_space<vmem>>, vector<16x40xf32>
    %1 = vector.extract_strided_slice %0 {offsets = [0, 0], sizes = [16, 32], strides = [1, 1]} : vector<16x40xf32> to vector<16x32xf32>
    %c0_1 = arith.constant 0 : index
    %c0_2 = arith.constant 0 : index
    %2 = vector.load %arg1[%c0_1, %c0_2] : memref<16x16xf32, #tpu.memory_space<vmem>>, vector<16x16xf32>
    %c0_3 = arith.constant 0 : index
    %c0_4 = arith.constant 0 : index
    %3 = vector.load %arg7[%c0_3, %c0_4] : memref<8x128xf32, #tpu.memory_space<vmem>>, vector<8x128xf32>
    %4 = vector.extract_strided_slice %3 {offsets = [0, 0], sizes = [1, 32], strides = [1, 1]} : vector<8x128xf32> to vector<1x32xf32>
    %5 = vector.shape_cast %4 : vector<1x32xf32> to vector<32xf32>
    %6 = vector.extract_strided_slice %3 {offsets = [1, 0], sizes = [1, 32], strides = [1, 1]} : vector<8x128xf32> to vector<1x32xf32>
    %7 = vector.shape_cast %6 : vector<1x32xf32> to vector<32xf32>
    %8 = vector.extract_strided_slice %3 {offsets = [2, 0], sizes = [1, 32], strides = [1, 1]} : vector<8x128xf32> to vector<1x32xf32>
    %9 = vector.shape_cast %8 : vector<1x32xf32> to vector<32xf32>
    %10 = vector.extract_strided_slice %3 {offsets = [3, 0], sizes = [1, 64], strides = [1, 1]} : vector<8x128xf32> to vector<1x64xf32>
    %11 = vector.shape_cast %10 : vector<1x64xf32> to vector<64xf32>
    %12 = vector.extract_strided_slice %3 {offsets = [4, 0], sizes = [1, 32], strides = [1, 1]} : vector<8x128xf32> to vector<1x32xf32>
    %13 = vector.shape_cast %12 : vector<1x32xf32> to vector<32xf32>
    %14 = vector.extract_strided_slice %3 {offsets = [5, 0], sizes = [1, 128], strides = [1, 1]} : vector<8x128xf32> to vector<1x128xf32>
    %15 = vector.shape_cast %14 : vector<1x128xf32> to vector<128xf32>
    %c0_5 = arith.constant 0 : index
    %c0_6 = arith.constant 0 : index
    %c0_7 = arith.constant 0 : index
    %16 = vector.load %arg2[%c0_5, %c0_6, %c0_7] : memref<4x40x40xf32, #tpu.memory_space<vmem>>, vector<1x40x40xf32>
    %17 = vector.shape_cast %16 : vector<1x40x40xf32> to vector<40x40xf32>
    %cst = arith.constant dense<0.000000e+00> : vector<16x40xf32>
    %18 = tpu.matmul %0, %17, %cst {dimension_numbers = #tpu.dot_dimension_numbers<[1], [0], [0], [1], [0, 0, 1, 1], [], []>} : vector<16x40xf32>, vector<40x40xf32>, vector<16x40xf32> -> vector<16x40xf32>
    %cst_8 = arith.constant dense<0.000000e+00> : vector<16x16xf32>
    %19 = tpu.matmul %18, %0, %cst_8 {dimension_numbers = #tpu.dot_dimension_numbers<[1], [1], [0], [0], [0, 0, 1, 0], [], []>} : vector<16x40xf32>, vector<16x40xf32>, vector<16x16xf32> -> vector<16x16xf32>
    %20 = arith.addf %19, %2 : vector<16x16xf32>
    %cst_9 = arith.constant dense<0xFF800000> : vector<16xf32>
    %21 = vector.multi_reduction <maximumf>, %20, %cst_9 [1] : vector<16x16xf32> to vector<16xf32>
    %22 = vector.shape_cast %21 : vector<16xf32> to vector<16x1xf32>
    %23 = vector.broadcast %22 : vector<16x1xf32> to vector<16x16xf32>
    %24 = arith.subf %20, %23 : vector<16x16xf32>
    %25 = math.exp %24 : vector<16x16xf32>
    %cst_10 = arith.constant dense<0.000000e+00> : vector<16xf32>
    %26 = vector.multi_reduction <add>, %25, %cst_10 [1] : vector<16x16xf32> to vector<16xf32>
    %27 = vector.shape_cast %26 : vector<16xf32> to vector<16x1xf32>
    %28 = tpu.reciprocal %27 {approx = true} : vector<16x1xf32> -> vector<16x1xf32>
    %29 = vector.broadcast %28 : vector<16x1xf32> to vector<16x16xf32>
    %30 = arith.mulf %25, %29 : vector<16x16xf32>
    %c0_11 = arith.constant 0 : index
    %c0_12 = arith.constant 0 : index
    %c0_13 = arith.constant 0 : index
    %31 = vector.load %arg3[%c0_11, %c0_12, %c0_13] : memref<4x40x32xf32, #tpu.memory_space<vmem>>, vector<1x40x32xf32>
    %32 = vector.shape_cast %31 : vector<1x40x32xf32> to vector<40x32xf32>
    %cst_14 = arith.constant dense<0.000000e+00> : vector<16x32xf32>
    %33 = tpu.matmul %0, %32, %cst_14 {dimension_numbers = #tpu.dot_dimension_numbers<[1], [0], [0], [1], [0, 0, 1, 1], [], []>} : vector<16x40xf32>, vector<40x32xf32>, vector<16x32xf32> -> vector<16x32xf32>
    %cst_15 = arith.constant dense<0.000000e+00> : vector<16x32xf32>
    %34 = tpu.matmul %30, %33, %cst_15 {dimension_numbers = #tpu.dot_dimension_numbers<[1], [0], [0], [1], [0, 0, 1, 1], [], []>} : vector<16x16xf32>, vector<16x32xf32>, vector<16x32xf32> -> vector<16x32xf32>
    %c1 = arith.constant 1 : index
    %c0_16 = arith.constant 0 : index
    %c0_17 = arith.constant 0 : index
    %35 = vector.load %arg2[%c1, %c0_16, %c0_17] : memref<4x40x40xf32, #tpu.memory_space<vmem>>, vector<1x40x40xf32>
    %36 = vector.shape_cast %35 : vector<1x40x40xf32> to vector<40x40xf32>
    %cst_18 = arith.constant dense<0.000000e+00> : vector<16x40xf32>
    %37 = tpu.matmul %0, %36, %cst_18 {dimension_numbers = #tpu.dot_dimension_numbers<[1], [0], [0], [1], [0, 0, 1, 1], [], []>} : vector<16x40xf32>, vector<40x40xf32>, vector<16x40xf32> -> vector<16x40xf32>
    %cst_19 = arith.constant dense<0.000000e+00> : vector<16x16xf32>
    %38 = tpu.matmul %37, %0, %cst_19 {dimension_numbers = #tpu.dot_dimension_numbers<[1], [1], [0], [0], [0, 0, 1, 0], [], []>} : vector<16x40xf32>, vector<16x40xf32>, vector<16x16xf32> -> vector<16x16xf32>
    %39 = arith.addf %38, %2 : vector<16x16xf32>
    %cst_20 = arith.constant dense<0xFF800000> : vector<16xf32>
    %40 = vector.multi_reduction <maximumf>, %39, %cst_20 [1] : vector<16x16xf32> to vector<16xf32>
    %41 = vector.shape_cast %40 : vector<16xf32> to vector<16x1xf32>
    %42 = vector.broadcast %41 : vector<16x1xf32> to vector<16x16xf32>
    %43 = arith.subf %39, %42 : vector<16x16xf32>
    %44 = math.exp %43 : vector<16x16xf32>
    %cst_21 = arith.constant dense<0.000000e+00> : vector<16xf32>
    %45 = vector.multi_reduction <add>, %44, %cst_21 [1] : vector<16x16xf32> to vector<16xf32>
    %46 = vector.shape_cast %45 : vector<16xf32> to vector<16x1xf32>
    %47 = tpu.reciprocal %46 {approx = true} : vector<16x1xf32> -> vector<16x1xf32>
    %48 = vector.broadcast %47 : vector<16x1xf32> to vector<16x16xf32>
    %49 = arith.mulf %44, %48 : vector<16x16xf32>
    %c1_22 = arith.constant 1 : index
    %c0_23 = arith.constant 0 : index
    %c0_24 = arith.constant 0 : index
    %50 = vector.load %arg3[%c1_22, %c0_23, %c0_24] : memref<4x40x32xf32, #tpu.memory_space<vmem>>, vector<1x40x32xf32>
    %51 = vector.shape_cast %50 : vector<1x40x32xf32> to vector<40x32xf32>
    %cst_25 = arith.constant dense<0.000000e+00> : vector<16x32xf32>
    %52 = tpu.matmul %0, %51, %cst_25 {dimension_numbers = #tpu.dot_dimension_numbers<[1], [0], [0], [1], [0, 0, 1, 1], [], []>} : vector<16x40xf32>, vector<40x32xf32>, vector<16x32xf32> -> vector<16x32xf32>
    %cst_26 = arith.constant dense<0.000000e+00> : vector<16x32xf32>
    %53 = tpu.matmul %49, %52, %cst_26 {dimension_numbers = #tpu.dot_dimension_numbers<[1], [0], [0], [1], [0, 0, 1, 1], [], []>} : vector<16x16xf32>, vector<16x32xf32>, vector<16x32xf32> -> vector<16x32xf32>
    %54 = arith.addf %34, %53 : vector<16x32xf32>
    %c2 = arith.constant 2 : index
    %c0_27 = arith.constant 0 : index
    %c0_28 = arith.constant 0 : index
    %55 = vector.load %arg2[%c2, %c0_27, %c0_28] : memref<4x40x40xf32, #tpu.memory_space<vmem>>, vector<1x40x40xf32>
    %56 = vector.shape_cast %55 : vector<1x40x40xf32> to vector<40x40xf32>
    %cst_29 = arith.constant dense<0.000000e+00> : vector<16x40xf32>
    %57 = tpu.matmul %0, %56, %cst_29 {dimension_numbers = #tpu.dot_dimension_numbers<[1], [0], [0], [1], [0, 0, 1, 1], [], []>} : vector<16x40xf32>, vector<40x40xf32>, vector<16x40xf32> -> vector<16x40xf32>
    %cst_30 = arith.constant dense<0.000000e+00> : vector<16x16xf32>
    %58 = tpu.matmul %57, %0, %cst_30 {dimension_numbers = #tpu.dot_dimension_numbers<[1], [1], [0], [0], [0, 0, 1, 0], [], []>} : vector<16x40xf32>, vector<16x40xf32>, vector<16x16xf32> -> vector<16x16xf32>
    %59 = arith.addf %58, %2 : vector<16x16xf32>
    %cst_31 = arith.constant dense<0xFF800000> : vector<16xf32>
    %60 = vector.multi_reduction <maximumf>, %59, %cst_31 [1] : vector<16x16xf32> to vector<16xf32>
    %61 = vector.shape_cast %60 : vector<16xf32> to vector<16x1xf32>
    %62 = vector.broadcast %61 : vector<16x1xf32> to vector<16x16xf32>
    %63 = arith.subf %59, %62 : vector<16x16xf32>
    %64 = math.exp %63 : vector<16x16xf32>
    %cst_32 = arith.constant dense<0.000000e+00> : vector<16xf32>
    %65 = vector.multi_reduction <add>, %64, %cst_32 [1] : vector<16x16xf32> to vector<16xf32>
    %66 = vector.shape_cast %65 : vector<16xf32> to vector<16x1xf32>
    %67 = tpu.reciprocal %66 {approx = true} : vector<16x1xf32> -> vector<16x1xf32>
    %68 = vector.broadcast %67 : vector<16x1xf32> to vector<16x16xf32>
    %69 = arith.mulf %64, %68 : vector<16x16xf32>
    %c2_33 = arith.constant 2 : index
    %c0_34 = arith.constant 0 : index
    %c0_35 = arith.constant 0 : index
    %70 = vector.load %arg3[%c2_33, %c0_34, %c0_35] : memref<4x40x32xf32, #tpu.memory_space<vmem>>, vector<1x40x32xf32>
    %71 = vector.shape_cast %70 : vector<1x40x32xf32> to vector<40x32xf32>
    %cst_36 = arith.constant dense<0.000000e+00> : vector<16x32xf32>
    %72 = tpu.matmul %0, %71, %cst_36 {dimension_numbers = #tpu.dot_dimension_numbers<[1], [0], [0], [1], [0, 0, 1, 1], [], []>} : vector<16x40xf32>, vector<40x32xf32>, vector<16x32xf32> -> vector<16x32xf32>
    %cst_37 = arith.constant dense<0.000000e+00> : vector<16x32xf32>
    %73 = tpu.matmul %69, %72, %cst_37 {dimension_numbers = #tpu.dot_dimension_numbers<[1], [0], [0], [1], [0, 0, 1, 1], [], []>} : vector<16x16xf32>, vector<16x32xf32>, vector<16x32xf32> -> vector<16x32xf32>
    %74 = arith.addf %54, %73 : vector<16x32xf32>
    %c3 = arith.constant 3 : index
    %c0_38 = arith.constant 0 : index
    %c0_39 = arith.constant 0 : index
    %75 = vector.load %arg2[%c3, %c0_38, %c0_39] : memref<4x40x40xf32, #tpu.memory_space<vmem>>, vector<1x40x40xf32>
    %76 = vector.shape_cast %75 : vector<1x40x40xf32> to vector<40x40xf32>
    %cst_40 = arith.constant dense<0.000000e+00> : vector<16x40xf32>
    %77 = tpu.matmul %0, %76, %cst_40 {dimension_numbers = #tpu.dot_dimension_numbers<[1], [0], [0], [1], [0, 0, 1, 1], [], []>} : vector<16x40xf32>, vector<40x40xf32>, vector<16x40xf32> -> vector<16x40xf32>
    %cst_41 = arith.constant dense<0.000000e+00> : vector<16x16xf32>
    %78 = tpu.matmul %77, %0, %cst_41 {dimension_numbers = #tpu.dot_dimension_numbers<[1], [1], [0], [0], [0, 0, 1, 0], [], []>} : vector<16x40xf32>, vector<16x40xf32>, vector<16x16xf32> -> vector<16x16xf32>
    %79 = arith.addf %78, %2 : vector<16x16xf32>
    %cst_42 = arith.constant dense<0xFF800000> : vector<16xf32>
    %80 = vector.multi_reduction <maximumf>, %79, %cst_42 [1] : vector<16x16xf32> to vector<16xf32>
    %81 = vector.shape_cast %80 : vector<16xf32> to vector<16x1xf32>
    %82 = vector.broadcast %81 : vector<16x1xf32> to vector<16x16xf32>
    %83 = arith.subf %79, %82 : vector<16x16xf32>
    %84 = math.exp %83 : vector<16x16xf32>
    %cst_43 = arith.constant dense<0.000000e+00> : vector<16xf32>
    %85 = vector.multi_reduction <add>, %84, %cst_43 [1] : vector<16x16xf32> to vector<16xf32>
    %86 = vector.shape_cast %85 : vector<16xf32> to vector<16x1xf32>
    %87 = tpu.reciprocal %86 {approx = true} : vector<16x1xf32> -> vector<16x1xf32>
    %88 = vector.broadcast %87 : vector<16x1xf32> to vector<16x16xf32>
    %89 = arith.mulf %84, %88 : vector<16x16xf32>
    %c3_44 = arith.constant 3 : index
    %c0_45 = arith.constant 0 : index
    %c0_46 = arith.constant 0 : index
    %90 = vector.load %arg3[%c3_44, %c0_45, %c0_46] : memref<4x40x32xf32, #tpu.memory_space<vmem>>, vector<1x40x32xf32>
    %91 = vector.shape_cast %90 : vector<1x40x32xf32> to vector<40x32xf32>
    %cst_47 = arith.constant dense<0.000000e+00> : vector<16x32xf32>
    %92 = tpu.matmul %0, %91, %cst_47 {dimension_numbers = #tpu.dot_dimension_numbers<[1], [0], [0], [1], [0, 0, 1, 1], [], []>} : vector<16x40xf32>, vector<40x32xf32>, vector<16x32xf32> -> vector<16x32xf32>
    %cst_48 = arith.constant dense<0.000000e+00> : vector<16x32xf32>
    %93 = tpu.matmul %89, %92, %cst_48 {dimension_numbers = #tpu.dot_dimension_numbers<[1], [0], [0], [1], [0, 0, 1, 1], [], []>} : vector<16x16xf32>, vector<16x32xf32>, vector<16x32xf32> -> vector<16x32xf32>
    %94 = arith.addf %74, %93 : vector<16x32xf32>
    %95 = vector.shape_cast %5 : vector<32xf32> to vector<1x32xf32>
    %96 = vector.broadcast %95 : vector<1x32xf32> to vector<16x32xf32>
    %97 = arith.addf %94, %96 : vector<16x32xf32>
    %98 = arith.addf %1, %97 : vector<16x32xf32>
    %cst_49 = arith.constant dense<0.000000e+00> : vector<16xf32>
    %99 = vector.multi_reduction <add>, %98, %cst_49 [1] : vector<16x32xf32> to vector<16xf32>
    %100 = vector.shape_cast %99 : vector<16xf32> to vector<16x1xf32>
    %cst_50 = arith.constant 3.200000e+01 : f32
    %101 = vector.broadcast %cst_50 : f32 to vector<16x1xf32>
    %102 = arith.divf %100, %101 : vector<16x1xf32>
    %103 = vector.broadcast %102 : vector<16x1xf32> to vector<16x32xf32>
    %104 = arith.subf %98, %103 : vector<16x32xf32>
    %105 = arith.mulf %104, %104 : vector<16x32xf32>
    %cst_51 = arith.constant dense<0.000000e+00> : vector<16xf32>
    %106 = vector.multi_reduction <add>, %105, %cst_51 [1] : vector<16x32xf32> to vector<16xf32>
    %107 = vector.shape_cast %106 : vector<16xf32> to vector<16x1xf32>
    %cst_52 = arith.constant 3.200000e+01 : f32
    %108 = vector.broadcast %cst_52 : f32 to vector<16x1xf32>
    %109 = arith.divf %107, %108 : vector<16x1xf32>
    %cst_53 = arith.constant 9.99999974E-6 : f32
    %110 = vector.broadcast %cst_53 : f32 to vector<16x1xf32>
    %111 = arith.addf %109, %110 : vector<16x1xf32>
    %112 = math.rsqrt %111 : vector<16x1xf32>
    %113 = vector.broadcast %112 : vector<16x1xf32> to vector<16x32xf32>
    %114 = arith.mulf %104, %113 : vector<16x32xf32>
    %115 = vector.shape_cast %7 : vector<32xf32> to vector<1x32xf32>
    %116 = vector.broadcast %115 : vector<1x32xf32> to vector<16x32xf32>
    %117 = arith.mulf %114, %116 : vector<16x32xf32>
    %118 = vector.shape_cast %9 : vector<32xf32> to vector<1x32xf32>
    %119 = vector.broadcast %118 : vector<1x32xf32> to vector<16x32xf32>
    %120 = arith.addf %117, %119 : vector<16x32xf32>
    %c0_54 = arith.constant 0 : index
    %c0_55 = arith.constant 0 : index
    %121 = vector.load %arg4[%c0_54, %c0_55] : memref<32x64xf32, #tpu.memory_space<vmem>>, vector<32x64xf32>
    %cst_56 = arith.constant dense<0.000000e+00> : vector<16x64xf32>
    %122 = tpu.matmul %120, %121, %cst_56 {dimension_numbers = #tpu.dot_dimension_numbers<[1], [0], [0], [1], [0, 0, 1, 1], [], []>} : vector<16x32xf32>, vector<32x64xf32>, vector<16x64xf32> -> vector<16x64xf32>
    %123 = vector.shape_cast %11 : vector<64xf32> to vector<1x64xf32>
    %124 = vector.broadcast %123 : vector<1x64xf32> to vector<16x64xf32>
    %125 = arith.addf %122, %124 : vector<16x64xf32>
    %cst_57 = arith.constant 0.000000e+00 : f32
    %126 = vector.broadcast %cst_57 : f32 to vector<16x64xf32>
    %127 = arith.maximumf %125, %126 : vector<16x64xf32>
    %c0_58 = arith.constant 0 : index
    %c0_59 = arith.constant 0 : index
    %128 = vector.load %arg5[%c0_58, %c0_59] : memref<64x32xf32, #tpu.memory_space<vmem>>, vector<64x32xf32>
    %cst_60 = arith.constant dense<0.000000e+00> : vector<16x32xf32>
    %129 = tpu.matmul %127, %128, %cst_60 {dimension_numbers = #tpu.dot_dimension_numbers<[1], [0], [0], [1], [0, 0, 1, 1], [], []>} : vector<16x64xf32>, vector<64x32xf32>, vector<16x32xf32> -> vector<16x32xf32>
    %130 = vector.shape_cast %13 : vector<32xf32> to vector<1x32xf32>
    %131 = vector.broadcast %130 : vector<1x32xf32> to vector<16x32xf32>
    %132 = arith.addf %129, %131 : vector<16x32xf32>
    %133 = arith.addf %120, %132 : vector<16x32xf32>
    %cst_61 = arith.constant dense<0.000000e+00> : vector<16xf32>
    %134 = vector.multi_reduction <add>, %133, %cst_61 [1] : vector<16x32xf32> to vector<16xf32>
    %135 = vector.shape_cast %134 : vector<16xf32> to vector<16x1xf32>
    %cst_62 = arith.constant 3.200000e+01 : f32
    %136 = vector.broadcast %cst_62 : f32 to vector<16x1xf32>
    %137 = arith.divf %135, %136 : vector<16x1xf32>
    %138 = vector.broadcast %137 : vector<16x1xf32> to vector<16x32xf32>
    %139 = arith.subf %133, %138 : vector<16x32xf32>
    %140 = arith.mulf %139, %139 : vector<16x32xf32>
    %cst_63 = arith.constant dense<0.000000e+00> : vector<16xf32>
    %141 = vector.multi_reduction <add>, %140, %cst_63 [1] : vector<16x32xf32> to vector<16xf32>
    %142 = vector.shape_cast %141 : vector<16xf32> to vector<16x1xf32>
    %cst_64 = arith.constant 3.200000e+01 : f32
    %143 = vector.broadcast %cst_64 : f32 to vector<16x1xf32>
    %144 = arith.divf %142, %143 : vector<16x1xf32>
    %cst_65 = arith.constant 9.99999974E-6 : f32
    %145 = vector.broadcast %cst_65 : f32 to vector<16x1xf32>
    %146 = arith.addf %144, %145 : vector<16x1xf32>
    %147 = math.rsqrt %146 : vector<16x1xf32>
    %148 = vector.broadcast %147 : vector<16x1xf32> to vector<16x32xf32>
    %149 = arith.mulf %139, %148 : vector<16x32xf32>
    %c0_66 = arith.constant 0 : index
    %c0_67 = arith.constant 0 : index
    %150 = vector.load %arg6[%c0_66, %c0_67] : memref<32x128xf32, #tpu.memory_space<vmem>>, vector<32x128xf32>
    %cst_68 = arith.constant dense<0.000000e+00> : vector<16x128xf32>
    %151 = tpu.matmul %149, %150, %cst_68 {dimension_numbers = #tpu.dot_dimension_numbers<[1], [0], [0], [1], [0, 0, 1, 1], [], []>} : vector<16x32xf32>, vector<32x128xf32>, vector<16x128xf32> -> vector<16x128xf32>
    %152 = vector.shape_cast %15 : vector<128xf32> to vector<1x128xf32>
    %153 = vector.broadcast %152 : vector<1x128xf32> to vector<16x128xf32>
    %154 = arith.addf %151, %153 : vector<16x128xf32>
    %c0_69 = arith.constant 0 : index
    %c0_70 = arith.constant 0 : index
    %155 = vector.load %arg8[%c0_69, %c0_70] : memref<16x128xf32, #tpu.memory_space<vmem>>, vector<16x128xf32>
    tpu.vector_store %arg8[%c0_69, %c0_70], %154 {strides = array<i32>} : memref<16x128xf32, #tpu.memory_space<vmem>>, vector<16x128xf32>,
    return
  }
}

</mosaic_0001>

<llo_original>
// kernel: tile.8
$region0: #{tile.8}
  #allocation0 [shape = 's32[1]{0}', space=sflag, size = 0x4, scoped, tag = 'scoped memory for tile.8']
  %s0 = inlined_call_operand.vmem [shape: f32[8,8], index: 0, kind: input, shape index: {}]
  %s1 = inlined_call_operand.vmem [shape: f32[2,8,2,8], index: 1, kind: output, shape index: {}]
  // Predicated region
  $region2: #{tile.8} parent=0 // pred_check
    _
  $region3: #{tile.8} parent=0 // pred_check_branch
    %3 = sbr.rel (0) target = $region5
  $region4: #{tile.8} parent=0 // pred_region
    _
  $region5: #{tile.8} parent=0 // pred_fallthru
    _
  %v4 = vld [vmem:[%s0] ss:$0 sm:$0xff]
  %5 = vst [vmem:[%s1] sm:$0x3] %v4
  %s6 = scalar_lea.vmem %s1, 16
  %7 = vst [vmem:[%s6] sm:$0x3] %v4
  %s8 = scalar_lea.vmem %s0, 1
  %v9 = vld [vmem:[%s8] ss:$0 sm:$0xff]
  %s10 = scalar_lea.vmem %s1, 2
  %11 = vst [vmem:[%s10] sm:$0x3] %v9
  %s12 = scalar_lea.vmem %s1, 18
  %13 = vst [vmem:[%s12] sm:$0x3] %v9
  %s14 = scalar_lea.vmem %s0, 2
  %v15 = vld [vmem:[%s14] ss:$0 sm:$0xff]
  %s16 = scalar_lea.vmem %s1, 4
  %17 = vst [vmem:[%s16] sm:$0x3] %v15
  %s18 = scalar_lea.vmem %s1, 20
  %19 = vst [vmem:[%s18] sm:$0x3] %v15
  %s20 = scalar_lea.vmem %s0, 3
  %v21 = vld [vmem:[%s20] ss:$0 sm:$0xff]
  %s22 = scalar_lea.vmem %s1, 6
  %23 = vst [vmem:[%s22] sm:$0x3] %v21
  %s24 = scalar_lea.vmem %s1, 22
  %25 = vst [vmem:[%s24] sm:$0x3] %v21
  %s26 = scalar_lea.vmem %s0, 4
  %v27 = vld [vmem:[%s26] ss:$0 sm:$0xff]
  %s28 = scalar_lea.vmem %s1, 8
  %29 = vst [vmem:[%s28] sm:$0x3] %v27
  %s30 = scalar_lea.vmem %s1, 24
  %31 = vst [vmem:[%s30] sm:$0x3] %v27
  %s32 = scalar_lea.vmem %s0, 5
  %v33 = vld [vmem:[%s32] ss:$0 sm:$0xff]
  %s34 = scalar_lea.vmem %s1, 10
  %35 = vst [vmem:[%s34] sm:$0x3] %v33
  %s36 = scalar_lea.vmem %s1, 26
  %37 = vst [vmem:[%s36] sm:$0x3] %v33
  %s38 = scalar_lea.vmem %s0, 6
  %v39 = vld [vmem:[%s38] ss:$0 sm:$0xff]
  %s40 = scalar_lea.vmem %s1, 12
  %41 = vst [vmem:[%s40] sm:$0x3] %v39
  %s42 = scalar_lea.vmem %s1, 28
  %43 = vst [vmem:[%s42] sm:$0x3] %v39
  %s44 = scalar_lea.vmem %s0, 7
  %v45 = vld [vmem:[%s44] ss:$0 sm:$0xff]
  %s46 = scalar_lea.vmem %s1, 14
  %47 = vst [vmem:[%s46] sm:$0x3] %v45
  %s48 = scalar_lea.vmem %s1, 30
  %49 = vst [vmem:[%s48] sm:$0x3] %v45

// kernel: tile.9
$region0: #{tile.9}
  %s0 = inlined_call_operand.vmem [shape: f32[2,8,2,8], index: 0, kind: input, shape index: {}]
  %s1 = inlined_call_operand.vmem [shape: f32[16,16], index: 1, kind: output, shape index: {}]
  $region1: #{tile.9} parent=0
    #allocation0 [shape = 'u8[65536]{0}', space=vmem, size = 0x10000, scoped, tag = 'scoped mem for input reshape']
    %s3 = sshll.u32 1, 2
    %s4 = ssub.s32 %s3, 1
    %s5 = smul.addr 2, 15
    %s6 = scalar_lea.vmem %s0, %s5
    %v7 = vld [vmem:[%s6] sm:%s4]
    %s8 = scalar_lea.vmem [#allocation0], 120
    %9 = vst [vmem:[%s8] sm:%s4] %v7
    %s10 = smul.addr 2, 14
    %s11 = scalar_lea.vmem %s0, %s10
    %v12 = vld [vmem:[%s11] sm:%s4]
    %s13 = scalar_lea.vmem [#allocation0], 112
    %14 = vst [vmem:[%s13] sm:%s4] %v12
    %s15 = smul.addr 2, 13
    %s16 = scalar_lea.vmem %s0, %s15
    %v17 = vld [vmem:[%s16] sm:%s4]
    %s18 = scalar_lea.vmem [#allocation0], 104
    %19 = vst [vmem:[%s18] sm:%s4] %v17
    %s20 = smul.addr 2, 12
    %s21 = scalar_lea.vmem %s0, %s20
    %v22 = vld [vmem:[%s21] sm:%s4]
    %s23 = scalar_lea.vmem [#allocation0], 96
    %24 = vst [vmem:[%s23] sm:%s4] %v22
    %s25 = smul.addr 2, 11
    %s26 = scalar_lea.vmem %s0, %s25
    %v27 = vld [vmem:[%s26] sm:%s4]
    %s28 = scalar_lea.vmem [#allocation0], 88
    %29 = vst [vmem:[%s28] sm:%s4] %v27
    %s30 = smul.addr 2, 10
    %s31 = scalar_lea.vmem %s0, %s30
    %v32 = vld [vmem:[%s31] sm:%s4]
    %s33 = scalar_lea.vmem [#allocation0], 80
    %34 = vst [vmem:[%s33] sm:%s4] %v32
    %s35 = smul.addr 2, 9
    %s36 = scalar_lea.vmem %s0, %s35
    %v37 = vld [vmem:[%s36] sm:%s4]
    %s38 = scalar_lea.vmem [#allocation0], 72
    %39 = vst [vmem:[%s38] sm:%s4] %v37
    %s40 = smul.addr 2, 8
    %s41 = scalar_lea.vmem %s0, %s40
    %v42 = vld [vmem:[%s41] sm:%s4]
    %s43 = scalar_lea.vmem [#allocation0], 64
    %44 = vst [vmem:[%s43] sm:%s4] %v42
    %s45 = smul.addr 2, 7
    %s46 = scalar_lea.vmem %s0, %s45
    %v47 = vld [vmem:[%s46] sm:%s4]
    %s48 = scalar_lea.vmem [#allocation0], 56
    %49 = vst [vmem:[%s48] sm:%s4] %v47
    %s50 = smul.addr 2, 6
    %s51 = scalar_lea.vmem %s0, %s50
    %v52 = vld [vmem:[%s51] sm:%s4]
    %s53 = scalar_lea.vmem [#allocation0], 48
    %54 = vst [vmem:[%s53] sm:%s4] %v52
    %s55 = smul.addr 2, 5
    %s56 = scalar_lea.vmem %s0, %s55
    %v57 = vld [vmem:[%s56] sm:%s4]
    %s58 = scalar_lea.vmem [#allocation0], 40
    %59 = vst [vmem:[%s58] sm:%s4] %v57
    %s60 = smul.addr 2, 4
    %s61 = scalar_lea.vmem %s0, %s60
    %v62 = vld [vmem:[%s61] sm:%s4]
    %s63 = scalar_lea.vmem [#allocation0], 32
    %64 = vst [vmem:[%s63] sm:%s4] %v62
    %s65 = smul.addr 2, 3
    %s66 = scalar_lea.vmem %s0, %s65
    %v67 = vld [vmem:[%s66] sm:%s4]
    %s68 = scalar_lea.vmem [#allocation0], 24
    %69 = vst [vmem:[%s68] sm:%s4] %v67
    %s70 = smul.addr 2, 2
    %s71 = scalar_lea.vmem %s0, %s70
    %v72 = vld [vmem:[%s71] sm:%s4]
    %s73 = scalar_lea.vmem [#allocation0], 16
    %74 = vst [vmem:[%s73] sm:%s4] %v72
    %s75 = scalar_lea.vmem %s0, 2
    %v76 = vld [vmem:[%s75] sm:%s4]
    %s77 = scalar_lea.vmem [#allocation0], 8
    %78 = vst [vmem:[%s77] sm:%s4] %v76
    %v79 = vld [vmem:[%s0] sm:%s4]
    %80 = vst [vmem:[#allocation0] sm:%s4] %v79
    %v81 = vld [vmem:[#allocation0] ss:$8 sm:$0xf]
    %v82 = vld [vmem:[#allocation0] ss:$8 sm:$0xf0]
    %vm83 = vcmask 1047556
    %v84 = vsel %vm83, %v82, %v81
    %vm85 = vcmask 64512
    %86 = vst.msk [vmem:[%s1] sm:$0xff] %vm85, %v84
    %s87 = scalar_lea.vmem [#allocation0], 64
    %v88 = vld [vmem:[%s87] ss:$8 sm:$0xf]
    %s89 = scalar_lea.vmem [#allocation0], 64
    %v90 = vld [vmem:[%s89] ss:$8 sm:$0xf0]
    %vm91 = vcmask 1047556
    %v92 = vsel %vm91, %v90, %v88
    %vm93 = vcmask 64512
    %s94 = scalar_lea.vmem %s1, 8
    %95 = vst.msk [vmem:[%s94] sm:$0xff] %vm93, %v92
    %s96 = scalar_lea.vmem [#allocation0], 1
    %v97 = vld [vmem:[%s96] ss:$8 sm:$0xf]
    %s98 = scalar_lea.vmem [#allocation0], 1
    %v99 = vld [vmem:[%s98] ss:$8 sm:$0xf0]
    %vm100 = vcmask 1047556
    %v101 = vsel %vm100, %v99, %v97
    %102 = vrot.lane.b32.xlu0 %v101, 8
    %v103 = vpop.permute.xlu0 %102
    %vm104 = vcmask 130112
    %105 = vst.msk [vmem:[%s1] sm:$0xff] %vm104, %v103
    %s106 = scalar_lea.vmem [#allocation0], 65
    %v107 = vld [vmem:[%s106] ss:$8 sm:$0xf]
    %s108 = scalar_lea.vmem [#allocation0], 65
    %v109 = vld [vmem:[%s108] ss:$8 sm:$0xf0]
    %vm110 = vcmask 1047556
    %v111 = vsel %vm110, %v109, %v107
    %112 = vrot.lane.b32.xlu0 %v111, 8
    %v113 = vpop.permute.xlu0 %112
    %vm114 = vcmask 130112
    %s115 = scalar_lea.vmem %s1, 8
    %116 = vst.msk [vmem:[%s115] sm:$0xff] %vm114, %v113

// kernel: transformer_forward.1
$region0: #{transformer_forward.1}
  #allocation0 [shape = 'u32[]', space=smem, size = 0x4, offset = 0x4, fixed_abs, tag = 'smem constant byte address 0x4 - core index']
  #allocation1 [shape = 'u32[144,128]{1,0:T(1,128)}', space=vmem, size = 0x12000, scoped, tag = 'internal scratch']
  %s0 = inlined_call_operand.vmem [shape: f32[16,40], index: 0, kind: input, shape index: {}]
  %s1 = inlined_call_operand.vmem [shape: f32[16,16], index: 1, kind: input, shape index: {}]
  %s2 = inlined_call_operand.vmem [shape: f32[4,40,40], index: 2, kind: input, shape index: {}]
  %s3 = inlined_call_operand.vmem [shape: f32[4,40,32], index: 3, kind: input, shape index: {}]
  %s4 = inlined_call_operand.vmem [shape: f32[32,64], index: 4, kind: input, shape index: {}]
  %s5 = inlined_call_operand.vmem [shape: f32[64,32], index: 5, kind: input, shape index: {}]
  %s6 = inlined_call_operand.vmem [shape: f32[32,128], index: 6, kind: input, shape index: {}]
  %s7 = inlined_call_operand.vmem [shape: f32[8,128], index: 7, kind: input, shape index: {}]
  %s8 = inlined_call_operand.vmem [shape: f32[16,128], index: 8, kind: output, shape index: {}]
  %s9 = sld [smem:[#allocation0]]
  $region42: #{transformer_forward.1} parent=0
    _
  %s11 = ssub.s32 1, %s9
  %s12 = scalar_select 0, %s11, %s9
  // Predicated region
  $region2: #{transformer_forward.1} parent=0 // pred_check
    _
  $region3: #{transformer_forward.1} parent=0 // pred_check_branch
    %14 = sbr.rel (0) target = $region5
  $region4: #{transformer_forward.1} parent=0 // pred_region
    _
  $region5: #{transformer_forward.1} parent=0 // pred_fallthru
    _
  // Predicated region
  $region6: #{transformer_forward.1} parent=0 // pred_check
    _
  $region7: #{transformer_forward.1} parent=0 // pred_check_branch
    %16 = sbr.rel (0) target = $region9
  $region8: #{transformer_forward.1} parent=0 // pred_region
    _
  $region9: #{transformer_forward.1} parent=0 // pred_fallthru
    _
  // Predicated region
  $region10: #{transformer_forward.1} parent=0 // pred_check
    _
  $region11: #{transformer_forward.1} parent=0 // pred_check_branch
    %18 = sbr.rel (0) target = $region13
  $region12: #{transformer_forward.1} parent=0 // pred_region
    _
  $region13: #{transformer_forward.1} parent=0 // pred_fallthru
    _
  // Predicated region
  $region14: #{transformer_forward.1} parent=0 // pred_check
    _
  $region15: #{transformer_forward.1} parent=0 // pred_check_branch
    %20 = sbr.rel (0) target = $region17
  $region16: #{transformer_forward.1} parent=0 // pred_region
    _
  $region17: #{transformer_forward.1} parent=0 // pred_fallthru
    _
  // Predicated region
  $region18: #{transformer_forward.1} parent=0 // pred_check
    _
  $region19: #{transformer_forward.1} parent=0 // pred_check_branch
    %22 = sbr.rel (0) target = $region21
  $region20: #{transformer_forward.1} parent=0 // pred_region
    _
  $region21: #{transformer_forward.1} parent=0 // pred_fallthru
    _
  // Predicated region
  $region22: #{transformer_forward.1} parent=0 // pred_check
    _
  $region23: #{transformer_forward.1} parent=0 // pred_check_branch
    %24 = sbr.rel (0) target = $region25
  $region24: #{transformer_forward.1} parent=0 // pred_region
    _
  $region25: #{transformer_forward.1} parent=0 // pred_fallthru
    _
  // Predicated region
  $region26: #{transformer_forward.1} parent=0 // pred_check
    _
  $region27: #{transformer_forward.1} parent=0 // pred_check_branch
    %26 = sbr.rel (0) target = $region29
  $region28: #{transformer_forward.1} parent=0 // pred_region
    _
  $region29: #{transformer_forward.1} parent=0 // pred_fallthru
    _
  // Predicated region
  $region30: #{transformer_forward.1} parent=0 // pred_check
    _
  $region31: #{transformer_forward.1} parent=0 // pred_check_branch
    %28 = sbr.rel (0) target = $region33
  $region32: #{transformer_forward.1} parent=0 // pred_region
    _
  $region33: #{transformer_forward.1} parent=0 // pred_fallthru
    _
  %v29 = vld [vmem:[%s0] sm:$0xff]
  %v30 = vld [vmem:[%s0 + $0x8] sm:$0xff]
  %v31 = vld [vmem:[%s1] sm:$0xff]
  %v32 = vld [vmem:[%s1 + $0x8] sm:$0xff]
  %v33 = vld [vmem:[%s7] sm:$0xff]
  %v34 = vld [vmem:[%s2] sm:$0xff]
  %v35 = vld [vmem:[%s2 + $0x8] sm:$0xff]
  %v36 = vld [vmem:[%s2 + $0x10] sm:$0xff]
  %v37 = vld [vmem:[%s2 + $0x18] sm:$0xff]
  %v38 = vld [vmem:[%s2 + $0x20] sm:$0xff]
  %vm39 = vcmask 326656
  %v41 = vsel %vm39, %v29, 0
  %v44 = vsel %vm39, %v30, 0
  %46 = vmatprep.subr.mxu0 0.0
  %47 = vmatpush1.msra.mxu0 0.0
  %48 = vmatprep.subr.mxu0 0.0
  %49 = vmatpush1.msra.mxu0 0.0
  %50 = vmatprep.subr.mxu0 0.0
  %51 = vmatpush1.msra.mxu0 0.0
  %52 = vmatprep.subr.mxu0 0.0
  %53 = vmatpush1.msra.mxu0 0.0
  %54 = vmatprep.subr.mxu0 0.0
  %55 = vmatpush1.msra.mxu0 0.0
  %56 = vmatprep.subr.mxu0 0.0
  %57 = vmatpush1.msra.mxu0 0.0
  %58 = vmatprep.subr.mxu0 0.0
  %59 = vmatpush1.msra.mxu0 0.0
  %60 = vmatprep.subr.mxu0 0.0
  %61 = vmatpush1.msra.mxu0 0.0
  %62 = vmatprep.subr.mxu0 0.0
  %63 = vmatpush1.msra.mxu0 0.0
  %64 = vmatprep.subr.mxu0 0.0
  %65 = vmatpush1.msra.mxu0 0.0
  %66 = vmatprep.subr.mxu0 0.0
  %67 = vmatpush1.msra.mxu0 0.0
  %68 = vmatprep.subr.mxu0 0.0
  %69 = vmatpush1.msra.mxu0 %v38
  %70 = vmatprep.subr.mxu0 0.0
  %71 = vmatpush1.msra.mxu0 %v37
  %72 = vmatprep.subr.mxu0 0.0
  %73 = vmatpush1.msra.mxu0 %v36
  %74 = vmatprep.subr.mxu0 0.0
  %75 = vmatpush1.msra.mxu0 %v35
  %76 = vmatprep.subr.mxu0 0.0
  %77 = vmatpush1.msra.mxu0 %v34
  %78 = vmatprep.subr.mxu0 0.0
  %79 = vmatpush2.msra.mxu0 0.0
  %80 = vmatprep.subr.mxu0 0.0
  %81 = vmatpush2.msra.mxu0 0.0
  %82 = vmatprep.subr.mxu0 0.0
  %83 = vmatpush2.msra.mxu0 0.0
  %84 = vmatprep.subr.mxu0 0.0
  %85 = vmatpush2.msra.mxu0 0.0
  %86 = vmatprep.subr.mxu0 0.0
  %87 = vmatpush2.msra.mxu0 0.0
  %88 = vmatprep.subr.mxu0 0.0
  %89 = vmatpush2.msra.mxu0 0.0
  %90 = vmatprep.subr.mxu0 0.0
  %91 = vmatpush2.msra.mxu0 0.0
  %92 = vmatprep.subr.mxu0 0.0
  %93 = vmatpush2.msra.mxu0 0.0
  %94 = vmatprep.subr.mxu0 0.0
  %95 = vmatpush2.msra.mxu0 0.0
  %96 = vmatprep.subr.mxu0 0.0
  %97 = vmatpush2.msra.mxu0 0.0
  %98 = vmatprep.subr.mxu0 0.0
  %99 = vmatpush2.msra.mxu0 0.0
  %100 = vmatprep.subr.mxu0 0.0
  %101 = vmatpush2.msra.mxu0 0.0
  %102 = vmatprep.subr.mxu0 0.0
  %103 = vmatpush2.msra.mxu0 0.0
  %104 = vmatprep.subr.mxu0 0.0
  %105 = vmatpush2.msra.mxu0 0.0
  %106 = vmatprep.subr.mxu0 0.0
  %107 = vmatpush2.msra.mxu0 0.0
  %108 = vmatprep.subr.mxu0 0.0
  %109 = vmatpush2.msra.mxu0 0.0
  %110 = vmatprep.mubr.f32.mxu0 0.0
  %111 = vmatmul.mubr.f32.gmra.mxu0 %v41
  %v112 = vpop.f32.mrf.mxu0
  %v113 = vadd.f32 0.0, %v112
  %v114 = vpop.f32.mrf.mxu0
  %115 = vmatprep.mubr.f32.mxu0 0.0
  %116 = vmatmul.mubr.f32.gmra.mxu0 %v44
  %v117 = vpop.f32.mrf.mxu0
  %v118 = vadd.f32 0.0, %v117
  %v119 = vpop.f32.mrf.mxu0
  %120 = vdwg.mxu0
  %v122 = vsel %vm39, %v113, 0
  %v125 = vsel %vm39, %v118, 0
  %127 = vmatprep.subr.mxu0 0.0
  %128 = vmatpush1.xpose.msra.mxu0 0.0
  %129 = vmatprep.subr.mxu0 0.0
  %130 = vmatpush1.xpose.msra.mxu0 0.0
  %131 = vmatprep.subr.mxu0 0.0
  %132 = vmatpush1.xpose.msra.mxu0 0.0
  %133 = vmatprep.subr.mxu0 0.0
  %134 = vmatpush1.xpose.msra.mxu0 0.0
  %135 = vmatprep.subr.mxu0 0.0
  %136 = vmatpush1.xpose.msra.mxu0 0.0
  %137 = vmatprep.subr.mxu0 0.0
  %138 = vmatpush1.xpose.msra.mxu0 0.0
  %139 = vmatprep.subr.mxu0 0.0
  %140 = vmatpush1.xpose.msra.mxu0 0.0
  %141 = vmatprep.subr.mxu0 0.0
  %142 = vmatpush1.xpose.msra.mxu0 0.0
  %143 = vmatprep.subr.mxu0 0.0
  %144 = vmatpush1.xpose.msra.mxu0 0.0
  %145 = vmatprep.subr.mxu0 0.0
  %146 = vmatpush1.xpose.msra.mxu0 0.0
  %147 = vmatprep.subr.mxu0 0.0
  %148 = vmatpush1.xpose.msra.mxu0 0.0
  %149 = vmatprep.subr.mxu0 0.0
  %150 = vmatpush1.xpose.msra.mxu0 0.0
  %151 = vmatprep.subr.mxu0 0.0
  %152 = vmatpush1.xpose.msra.mxu0 0.0
  %153 = vmatprep.subr.mxu0 0.0
  %154 = vmatpush1.xpose.msra.mxu0 0.0
  %155 = vmatprep.subr.mxu0 0.0
  %156 = vmatpush1.xpose.msra.mxu0 %v44
  %157 = vmatprep.subr.mxu0 0.0
  %158 = vmatpush1.xpose.msra.mxu0 %v41
  %159 = vmatprep.subr.mxu0 0.0
  %160 = vmatpush2.xpose.msra.mxu0 0.0
  %161 = vmatprep.subr.mxu0 0.0
  %162 = vmatpush2.xpose.msra.mxu0 0.0
  %163 = vmatprep.subr.mxu0 0.0
  %164 = vmatpush2.xpose.msra.mxu0 0.0
  %165 = vmatprep.subr.mxu0 0.0
  %166 = vmatpush2.xpose.msra.mxu0 0.0
  %167 = vmatprep.subr.mxu0 0.0
  %168 = vmatpush2.xpose.msra.mxu0 0.0
  %169 = vmatprep.subr.mxu0 0.0
  %170 = vmatpush2.xpose.msra.mxu0 0.0
  %171 = vmatprep.subr.mxu0 0.0
  %172 = vmatpush2.xpose.msra.mxu0 0.0
  %173 = vmatprep.subr.mxu0 0.0
  %174 = vmatpush2.xpose.msra.mxu0 0.0
  %175 = vmatprep.subr.mxu0 0.0
  %176 = vmatpush2.xpose.msra.mxu0 0.0
  %177 = vmatprep.subr.mxu0 0.0
  %178 = vmatpush2.xpose.msra.mxu0 0.0
  %179 = vmatprep.subr.mxu0 0.0
  %180 = vmatpush2.xpose.msra.mxu0 0.0
  %181 = vmatprep.subr.mxu0 0.0
  %182 = vmatpush2.xpose.msra.mxu0 0.0
  %183 = vmatprep.subr.mxu0 0.0
  %184 = vmatpush2.xpose.msra.mxu0 0.0
  %185 = vmatprep.subr.mxu0 0.0
  %186 = vmatpush2.xpose.msra.mxu0 0.0
  %187 = vmatprep.subr.mxu0 0.0
  %188 = vmatpush2.xpose.msra.mxu0 0.0
  %189 = vmatprep.subr.mxu0 0.0
  %190 = vmatpush2.xpose.msra.mxu0 0.0
  %191 = vmatprep.mubr.f32.mxu0 0.0
  %192 = vmatmul.mubr.f32.gmra.mxu0 %v122
  %v193 = vpop.f32.mrf.mxu0
  %v194 = vadd.f32 %v31, %v193
  %v195 = vpop.f32.mrf.mxu0
  %196 = vmatprep.mubr.f32.mxu0 0.0
  %197 = vmatmul.mubr.f32.gmra.mxu0 %v125
  %v198 = vpop.f32.mrf.mxu0
  %v199 = vadd.f32 %v32, %v198
  %v200 = vpop.f32.mrf.mxu0
  %201 = vdwg.mxu0
  %vm202 = vcmask 130048
  %v203 = vsel %vm202, %v194, -inf
  %204 = vmax.xlane.f32.xlu0 %v203
  %v205 = vpop.xlane.xlu0 %204
  %v206 = vsel %vm202, %v199, -inf
  %207 = vmax.xlane.f32.xlu0 %v206
  %v208 = vpop.xlane.xlu0 %207
  %v209 = vsub.f32 %v194, %v205
  %v210 = vsub.f32 %v199, %v208
  %v211 = vmul.f32 %v209, 1.442695
  %v212 = vpow.pop %v211
  %v213 = vmul.f32 %v210, 1.442695
  %v214 = vpow.pop %v213
  %v215 = vsel %vm202, %v212, 0.0
  %216 = vadd.xlane.f32.xlu0 %v215
  %v217 = vpop.xlane.xlu0 %216
  %v218 = vsel %vm202, %v214, 0.0
  %219 = vadd.xlane.f32.xlu0 %v218
  %v220 = vpop.xlane.xlu0 %219
  %v221 = vrcp.pop %v217
  %v222 = vrcp.pop %v220
  %v223 = vmul.f32 %v212, %v221
  %v224 = vmul.f32 %v214, %v222
  %v225 = vld [vmem:[%s3] sm:$0xff]
  %v226 = vld [vmem:[%s3 + $0x8] sm:$0xff]
  %v227 = vld [vmem:[%s3 + $0x10] sm:$0xff]
  %v228 = vld [vmem:[%s3 + $0x18] sm:$0xff]
  %v229 = vld [vmem:[%s3 + $0x20] sm:$0xff]
  %230 = vmatprep.subr.mxu0 0.0
  %231 = vmatpush1.msra.mxu0 0.0
  %232 = vmatprep.subr.mxu0 0.0
  %233 = vmatpush1.msra.mxu0 0.0
  %234 = vmatprep.subr.mxu0 0.0
  %235 = vmatpush1.msra.mxu0 0.0
  %236 = vmatprep.subr.mxu0 0.0
  %237 = vmatpush1.msra.mxu0 0.0
  %238 = vmatprep.subr.mxu0 0.0
  %239 = vmatpush1.msra.mxu0 0.0
  %240 = vmatprep.subr.mxu0 0.0
  %241 = vmatpush1.msra.mxu0 0.0
  %242 = vmatprep.subr.mxu0 0.0
  %243 = vmatpush1.msra.mxu0 0.0
  %244 = vmatprep.subr.mxu0 0.0
  %245 = vmatpush1.msra.mxu0 0.0
  %246 = vmatprep.subr.mxu0 0.0
  %247 = vmatpush1.msra.mxu0 0.0
  %248 = vmatprep.subr.mxu0 0.0
  %249 = vmatpush1.msra.mxu0 0.0
  %250 = vmatprep.subr.mxu0 0.0
  %251 = vmatpush1.msra.mxu0 0.0
  %252 = vmatprep.subr.mxu0 0.0
  %253 = vmatpush1.msra.mxu0 %v229
  %254 = vmatprep.subr.mxu0 0.0
  %255 = vmatpush1.msra.mxu0 %v228
  %256 = vmatprep.subr.mxu0 0.0
  %257 = vmatpush1.msra.mxu0 %v227
  %258 = vmatprep.subr.mxu0 0.0
  %259 = vmatpush1.msra.mxu0 %v226
  %260 = vmatprep.subr.mxu0 0.0
  %261 = vmatpush1.msra.mxu0 %v225
  %262 = vmatprep.subr.mxu0 0.0
  %263 = vmatpush2.msra.mxu0 0.0
  %264 = vmatprep.subr.mxu0 0.0
  %265 = vmatpush2.msra.mxu0 0.0
  %266 = vmatprep.subr.mxu0 0.0
  %267 = vmatpush2.msra.mxu0 0.0
  %268 = vmatprep.subr.mxu0 0.0
  %269 = vmatpush2.msra.mxu0 0.0
  %270 = vmatprep.subr.mxu0 0.0
  %271 = vmatpush2.msra.mxu0 0.0
  %272 = vmatprep.subr.mxu0 0.0
  %273 = vmatpush2.msra.mxu0 0.0
  %274 = vmatprep.subr.mxu0 0.0
  %275 = vmatpush2.msra.mxu0 0.0
  %276 = vmatprep.subr.mxu0 0.0
  %277 = vmatpush2.msra.mxu0 0.0
  %278 = vmatprep.subr.mxu0 0.0
  %279 = vmatpush2.msra.mxu0 0.0
  %280 = vmatprep.subr.mxu0 0.0
  %281 = vmatpush2.msra.mxu0 0.0
  %282 = vmatprep.subr.mxu0 0.0
  %283 = vmatpush2.msra.mxu0 0.0
  %284 = vmatprep.subr.mxu0 0.0
  %285 = vmatpush2.msra.mxu0 0.0
  %286 = vmatprep.subr.mxu0 0.0
  %287 = vmatpush2.msra.mxu0 0.0
  %288 = vmatprep.subr.mxu0 0.0
  %289 = vmatpush2.msra.mxu0 0.0
  %290 = vmatprep.subr.mxu0 0.0
  %291 = vmatpush2.msra.mxu0 0.0
  %292 = vmatprep.subr.mxu0 0.0
  %293 = vmatpush2.msra.mxu0 0.0
  %294 = vmatprep.mubr.f32.mxu0 0.0
  %295 = vmatmul.mubr.f32.gmra.mxu0 %v41
  %v296 = vpop.f32.mrf.mxu0
  %v297 = vadd.f32 0.0, %v296
  %v298 = vpop.f32.mrf.mxu0
  %299 = vmatprep.mubr.f32.mxu0 0.0
  %300 = vmatmul.mubr.f32.gmra.mxu0 %v44
  %v301 = vpop.f32.mrf.mxu0
  %v302 = vadd.f32 0.0, %v301
  %v303 = vpop.f32.mrf.mxu0
  %304 = vdwg.mxu0
  %s305 = scalar_lea.vmem %s2, 40
  %v306 = vld [vmem:[%s305] sm:$0xff]
  %v307 = vld [vmem:[%s305 + $0x8] sm:$0xff]
  %v308 = vld [vmem:[%s305 + $0x10] sm:$0xff]
  %v309 = vld [vmem:[%s305 + $0x18] sm:$0xff]
  %v310 = vld [vmem:[%s305 + $0x20] sm:$0xff]
  %311 = vmatprep.subr.mxu0 0.0
  %312 = vmatpush1.msra.mxu0 0.0
  %313 = vmatprep.subr.mxu0 0.0
  %314 = vmatpush1.msra.mxu0 0.0
  %315 = vmatprep.subr.mxu0 0.0
  %316 = vmatpush1.msra.mxu0 0.0
  %317 = vmatprep.subr.mxu0 0.0
  %318 = vmatpush1.msra.mxu0 0.0
  %319 = vmatprep.subr.mxu0 0.0
  %320 = vmatpush1.msra.mxu0 0.0
  %321 = vmatprep.subr.mxu0 0.0
  %322 = vmatpush1.msra.mxu0 0.0
  %323 = vmatprep.subr.mxu0 0.0
  %324 = vmatpush1.msra.mxu0 0.0
  %325 = vmatprep.subr.mxu0 0.0
  %326 = vmatpush1.msra.mxu0 0.0
  %327 = vmatprep.subr.mxu0 0.0
  %328 = vmatpush1.msra.mxu0 0.0
  %329 = vmatprep.subr.mxu0 0.0
  %330 = vmatpush1.msra.mxu0 0.0
  %331 = vmatprep.subr.mxu0 0.0
  %332 = vmatpush1.msra.mxu0 0.0
  %333 = vmatprep.subr.mxu0 0.0
  %334 = vmatpush1.msra.mxu0 %v310
  %335 = vmatprep.subr.mxu0 0.0
  %336 = vmatpush1.msra.mxu0 %v309
  %337 = vmatprep.subr.mxu0 0.0
  %338 = vmatpush1.msra.mxu0 %v308
  %339 = vmatprep.subr.mxu0 0.0
  %340 = vmatpush1.msra.mxu0 %v307
  %341 = vmatprep.subr.mxu0 0.0
  %342 = vmatpush1.msra.mxu0 %v306
  %343 = vmatprep.subr.mxu0 0.0
  %344 = vmatpush2.msra.mxu0 0.0
  %345 = vmatprep.subr.mxu0 0.0
  %346 = vmatpush2.msra.mxu0 0.0
  %347 = vmatprep.subr.mxu0 0.0
  %348 = vmatpush2.msra.mxu0 0.0
  %349 = vmatprep.subr.mxu0 0.0
  %350 = vmatpush2.msra.mxu0 0.0
  %351 = vmatprep.subr.mxu0 0.0
  %352 = vmatpush2.msra.mxu0 0.0
  %353 = vmatprep.subr.mxu0 0.0
  %354 = vmatpush2.msra.mxu0 0.0
  %355 = vmatprep.subr.mxu0 0.0
  %356 = vmatpush2.msra.mxu0 0.0
  %357 = vmatprep.subr.mxu0 0.0
  %358 = vmatpush2.msra.mxu0 0.0
  %359 = vmatprep.subr.mxu0 0.0
  %360 = vmatpush2.msra.mxu0 0.0
  %361 = vmatprep.subr.mxu0 0.0
  %362 = vmatpush2.msra.mxu0 0.0
  %363 = vmatprep.subr.mxu0 0.0
  %364 = vmatpush2.msra.mxu0 0.0
  %365 = vmatprep.subr.mxu0 0.0
  %366 = vmatpush2.msra.mxu0 0.0
  %367 = vmatprep.subr.mxu0 0.0
  %368 = vmatpush2.msra.mxu0 0.0
  %369 = vmatprep.subr.mxu0 0.0
  %370 = vmatpush2.msra.mxu0 0.0
  %371 = vmatprep.subr.mxu0 0.0
  %372 = vmatpush2.msra.mxu0 0.0
  %373 = vmatprep.subr.mxu0 0.0
  %374 = vmatpush2.msra.mxu0 0.0
  %375 = vmatprep.mubr.f32.mxu0 0.0
  %376 = vmatmul.mubr.f32.gmra.mxu0 %v41
  %v377 = vpop.f32.mrf.mxu0
  %v378 = vadd.f32 0.0, %v377
  %v379 = vpop.f32.mrf.mxu0
  %380 = vmatprep.mubr.f32.mxu0 0.0
  %381 = vmatmul.mubr.f32.gmra.mxu0 %v44
  %v382 = vpop.f32.mrf.mxu0
  %v383 = vadd.f32 0.0, %v382
  %v384 = vpop.f32.mrf.mxu0
  %385 = vdwg.mxu0
  %v387 = vsel %vm39, %v378, 0
  %v390 = vsel %vm39, %v383, 0
  %392 = vmatprep.subr.mxu0 0.0
  %393 = vmatpush1.xpose.msra.mxu0 0.0
  %394 = vmatprep.subr.mxu0 0.0
  %395 = vmatpush1.xpose.msra.mxu0 0.0
  %396 = vmatprep.subr.mxu0 0.0
  %397 = vmatpush1.xpose.msra.mxu0 0.0
  %398 = vmatprep.subr.mxu0 0.0
  %399 = vmatpush1.xpose.msra.mxu0 0.0
  %400 = vmatprep.subr.mxu0 0.0
  %401 = vmatpush1.xpose.msra.mxu0 0.0
  %402 = vmatprep.subr.mxu0 0.0
  %403 = vmatpush1.xpose.msra.mxu0 0.0
  %404 = vmatprep.subr.mxu0 0.0
  %405 = vmatpush1.xpose.msra.mxu0 0.0
  %406 = vmatprep.subr.mxu0 0.0
  %407 = vmatpush1.xpose.msra.mxu0 0.0
  %408 = vmatprep.subr.mxu0 0.0
  %409 = vmatpush1.xpose.msra.mxu0 0.0
  %410 = vmatprep.subr.mxu0 0.0
  %411 = vmatpush1.xpose.msra.mxu0 0.0
  %412 = vmatprep.subr.mxu0 0.0
  %413 = vmatpush1.xpose.msra.mxu0 0.0
  %414 = vmatprep.subr.mxu0 0.0
  %415 = vmatpush1.xpose.msra.mxu0 0.0
  %416 = vmatprep.subr.mxu0 0.0
  %417 = vmatpush1.xpose.msra.mxu0 0.0
  %418 = vmatprep.subr.mxu0 0.0
  %419 = vmatpush1.xpose.msra.mxu0 0.0
  %420 = vmatprep.subr.mxu0 0.0
  %421 = vmatpush1.xpose.msra.mxu0 %v44
  %422 = vmatprep.subr.mxu0 0.0
  %423 = vmatpush1.xpose.msra.mxu0 %v41
  %424 = vmatprep.subr.mxu0 0.0
  %425 = vmatpush2.xpose.msra.mxu0 0.0
  %426 = vmatprep.subr.mxu0 0.0
  %427 = vmatpush2.xpose.msra.mxu0 0.0
  %428 = vmatprep.subr.mxu0 0.0
  %429 = vmatpush2.xpose.msra.mxu0 0.0
  %430 = vmatprep.subr.mxu0 0.0
  %431 = vmatpush2.xpose.msra.mxu0 0.0
  %432 = vmatprep.subr.mxu0 0.0
  %433 = vmatpush2.xpose.msra.mxu0 0.0
  %434 = vmatprep.subr.mxu0 0.0
  %435 = vmatpush2.xpose.msra.mxu0 0.0
  %436 = vmatprep.subr.mxu0 0.0
  %437 = vmatpush2.xpose.msra.mxu0 0.0
  %438 = vmatprep.subr.mxu0 0.0
  %439 = vmatpush2.xpose.msra.mxu0 0.0
  %440 = vmatprep.subr.mxu0 0.0
  %441 = vmatpush2.xpose.msra.mxu0 0.0
  %442 = vmatprep.subr.mxu0 0.0
  %443 = vmatpush2.xpose.msra.mxu0 0.0
  %444 = vmatprep.subr.mxu0 0.0
  %445 = vmatpush2.xpose.msra.mxu0 0.0
  %446 = vmatprep.subr.mxu0 0.0
  %447 = vmatpush2.xpose.msra.mxu0 0.0
  %448 = vmatprep.subr.mxu0 0.0
  %449 = vmatpush2.xpose.msra.mxu0 0.0
  %450 = vmatprep.subr.mxu0 0.0
  %451 = vmatpush2.xpose.msra.mxu0 0.0
  %452 = vmatprep.subr.mxu0 0.0
  %453 = vmatpush2.xpose.msra.mxu0 0.0
  %454 = vmatprep.subr.mxu0 0.0
  %455 = vmatpush2.xpose.msra.mxu0 0.0
  %456 = vmatprep.mubr.f32.mxu0 0.0
  %457 = vmatmul.mubr.f32.gmra.mxu0 %v387
  %v458 = vpop.f32.mrf.mxu0
  %v459 = vadd.f32 %v31, %v458
  %v460 = vpop.f32.mrf.mxu0
  %461 = vmatprep.mubr.f32.mxu0 0.0
  %462 = vmatmul.mubr.f32.gmra.mxu0 %v390
  %v463 = vpop.f32.mrf.mxu0
  %v464 = vadd.f32 %v32, %v463
  %v465 = vpop.f32.mrf.mxu0
  %466 = vdwg.mxu0
  %v467 = vsel %vm202, %v459, -inf
  %468 = vmax.xlane.f32.xlu0 %v467
  %v469 = vpop.xlane.xlu0 %468
  %v470 = vsel %vm202, %v464, -inf
  %471 = vmax.xlane.f32.xlu0 %v470
  %v472 = vpop.xlane.xlu0 %471
  %v473 = vsub.f32 %v459, %v469
  %v474 = vsub.f32 %v464, %v472
  %v475 = vmul.f32 %v473, 1.442695
  %v476 = vpow.pop %v475
  %v477 = vmul.f32 %v474, 1.442695
  %v478 = vpow.pop %v477
  %v479 = vsel %vm202, %v476, 0.0
  %480 = vadd.xlane.f32.xlu0 %v479
  %v481 = vpop.xlane.xlu0 %480
  %v482 = vsel %vm202, %v478, 0.0
  %483 = vadd.xlane.f32.xlu0 %v482
  %v484 = vpop.xlane.xlu0 %483
  %v485 = vrcp.pop %v481
  %v486 = vrcp.pop %v484
  %v487 = vmul.f32 %v476, %v485
  %v488 = vmul.f32 %v478, %v486
  %s489 = scalar_lea.vmem %s3, 40
  %v490 = vld [vmem:[%s489] sm:$0xff]
  %v491 = vld [vmem:[%s489 + $0x8] sm:$0xff]
  %v492 = vld [vmem:[%s489 + $0x10] sm:$0xff]
  %v493 = vld [vmem:[%s489 + $0x18] sm:$0xff]
  %v494 = vld [vmem:[%s489 + $0x20] sm:$0xff]
  %495 = vmatprep.subr.mxu0 0.0
  %496 = vmatpush1.msra.mxu0 0.0
  %497 = vmatprep.subr.mxu0 0.0
  %498 = vmatpush1.msra.mxu0 0.0
  %499 = vmatprep.subr.mxu0 0.0
  %500 = vmatpush1.msra.mxu0 0.0
  %501 = vmatprep.subr.mxu0 0.0
  %502 = vmatpush1.msra.mxu0 0.0
  %503 = vmatprep.subr.mxu0 0.0
  %504 = vmatpush1.msra.mxu0 0.0
  %505 = vmatprep.subr.mxu0 0.0
  %506 = vmatpush1.msra.mxu0 0.0
  %507 = vmatprep.subr.mxu0 0.0
  %508 = vmatpush1.msra.mxu0 0.0
  %509 = vmatprep.subr.mxu0 0.0
  %510 = vmatpush1.msra.mxu0 0.0
  %511 = vmatprep.subr.mxu0 0.0
  %512 = vmatpush1.msra.mxu0 0.0
  %513 = vmatprep.subr.mxu0 0.0
  %514 = vmatpush1.msra.mxu0 0.0
  %515 = vmatprep.subr.mxu0 0.0
  %516 = vmatpush1.msra.mxu0 0.0
  %517 = vmatprep.subr.mxu0 0.0
  %518 = vmatpush1.msra.mxu0 %v494
  %519 = vmatprep.subr.mxu0 0.0
  %520 = vmatpush1.msra.mxu0 %v493
  %521 = vmatprep.subr.mxu0 0.0
  %522 = vmatpush1.msra.mxu0 %v492
  %523 = vmatprep.subr.mxu0 0.0
  %524 = vmatpush1.msra.mxu0 %v491
  %525 = vmatprep.subr.mxu0 0.0
  %526 = vmatpush1.msra.mxu0 %v490
  %527 = vmatprep.subr.mxu0 0.0
  %528 = vmatpush2.msra.mxu0 0.0
  %529 = vmatprep.subr.mxu0 0.0
  %530 = vmatpush2.msra.mxu0 0.0
  %531 = vmatprep.subr.mxu0 0.0
  %532 = vmatpush2.msra.mxu0 0.0
  %533 = vmatprep.subr.mxu0 0.0
  %534 = vmatpush2.msra.mxu0 0.0
  %535 = vmatprep.subr.mxu0 0.0
  %536 = vmatpush2.msra.mxu0 0.0
  %537 = vmatprep.subr.mxu0 0.0
  %538 = vmatpush2.msra.mxu0 0.0
  %539 = vmatprep.subr.mxu0 0.0
  %540 = vmatpush2.msra.mxu0 0.0
  %541 = vmatprep.subr.mxu0 0.0
  %542 = vmatpush2.msra.mxu0 0.0
  %543 = vmatprep.subr.mxu0 0.0
  %544 = vmatpush2.msra.mxu0 0.0
  %545 = vmatprep.subr.mxu0 0.0
  %546 = vmatpush2.msra.mxu0 0.0
  %547 = vmatprep.subr.mxu0 0.0
  %548 = vmatpush2.msra.mxu0 0.0
  %549 = vmatprep.subr.mxu0 0.0
  %550 = vmatpush2.msra.mxu0 0.0
  %551 = vmatprep.subr.mxu0 0.0
  %552 = vmatpush2.msra.mxu0 0.0
  %553 = vmatprep.subr.mxu0 0.0
  %554 = vmatpush2.msra.mxu0 0.0
  %555 = vmatprep.subr.mxu0 0.0
  %556 = vmatpush2.msra.mxu0 0.0
  %557 = vmatprep.subr.mxu0 0.0
  %558 = vmatpush2.msra.mxu0 0.0
  %559 = vmatprep.mubr.f32.mxu0 0.0
  %560 = vmatmul.mubr.f32.gmra.mxu0 %v41
  %v561 = vpop.f32.mrf.mxu0
  %v562 = vadd.f32 0.0, %v561
  %v563 = vpop.f32.mrf.mxu0
  %564 = vmatprep.mubr.f32.mxu0 0.0
  %565 = vmatmul.mubr.f32.gmra.mxu0 %v44
  %v566 = vpop.f32.mrf.mxu0
  %v567 = vadd.f32 0.0, %v566
  %v568 = vpop.f32.mrf.mxu0
  %569 = vdwg.mxu0
  %v571 = vsel %vm202, %v487, 0
  %v574 = vsel %vm202, %v488, 0
  %576 = vmatprep.subr.mxu0 0.0
  %577 = vmatpush1.msra.mxu0 0.0
  %578 = vmatprep.subr.mxu0 0.0
  %579 = vmatpush1.msra.mxu0 0.0
  %580 = vmatprep.subr.mxu0 0.0
  %581 = vmatpush1.msra.mxu0 0.0
  %582 = vmatprep.subr.mxu0 0.0
  %583 = vmatpush1.msra.mxu0 0.0
  %584 = vmatprep.subr.mxu0 0.0
  %585 = vmatpush1.msra.mxu0 0.0
  %586 = vmatprep.subr.mxu0 0.0
  %587 = vmatpush1.msra.mxu0 0.0
  %588 = vmatprep.subr.mxu0 0.0
  %589 = vmatpush1.msra.mxu0 0.0
  %590 = vmatprep.subr.mxu0 0.0
  %591 = vmatpush1.msra.mxu0 0.0
  %592 = vmatprep.subr.mxu0 0.0
  %593 = vmatpush1.msra.mxu0 0.0
  %594 = vmatprep.subr.mxu0 0.0
  %595 = vmatpush1.msra.mxu0 0.0
  %596 = vmatprep.subr.mxu0 0.0
  %597 = vmatpush1.msra.mxu0 0.0
  %598 = vmatprep.subr.mxu0 0.0
  %599 = vmatpush1.msra.mxu0 0.0
  %600 = vmatprep.subr.mxu0 0.0
  %601 = vmatpush1.msra.mxu0 0.0
  %602 = vmatprep.subr.mxu0 0.0
  %603 = vmatpush1.msra.mxu0 0.0
  %604 = vmatprep.subr.mxu0 0.0
  %605 = vmatpush1.msra.mxu0 %v567
  %606 = vmatprep.subr.mxu0 0.0
  %607 = vmatpush1.msra.mxu0 %v562
  %608 = vmatprep.subr.mxu0 0.0
  %609 = vmatpush2.msra.mxu0 0.0
  %610 = vmatprep.subr.mxu0 0.0
  %611 = vmatpush2.msra.mxu0 0.0
  %612 = vmatprep.subr.mxu0 0.0
  %613 = vmatpush2.msra.mxu0 0.0
  %614 = vmatprep.subr.mxu0 0.0
  %615 = vmatpush2.msra.mxu0 0.0
  %616 = vmatprep.subr.mxu0 0.0
  %617 = vmatpush2.msra.mxu0 0.0
  %618 = vmatprep.subr.mxu0 0.0
  %619 = vmatpush2.msra.mxu0 0.0
  %620 = vmatprep.subr.mxu0 0.0
  %621 = vmatpush2.msra.mxu0 0.0
  %622 = vmatprep.subr.mxu0 0.0
  %623 = vmatpush2.msra.mxu0 0.0
  %624 = vmatprep.subr.mxu0 0.0
  %625 = vmatpush2.msra.mxu0 0.0
  %626 = vmatprep.subr.mxu0 0.0
  %627 = vmatpush2.msra.mxu0 0.0
  %628 = vmatprep.subr.mxu0 0.0
  %629 = vmatpush2.msra.mxu0 0.0
  %630 = vmatprep.subr.mxu0 0.0
  %631 = vmatpush2.msra.mxu0 0.0
  %632 = vmatprep.subr.mxu0 0.0
  %633 = vmatpush2.msra.mxu0 0.0
  %634 = vmatprep.subr.mxu0 0.0
  %635 = vmatpush2.msra.mxu0 0.0
  %636 = vmatprep.subr.mxu0 0.0
  %637 = vmatpush2.msra.mxu0 0.0
  %638 = vmatprep.subr.mxu0 0.0
  %639 = vmatpush2.msra.mxu0 0.0
  %640 = vmatprep.mubr.f32.mxu0 0.0
  %641 = vmatmul.mubr.f32.gmra.mxu0 %v571
  %v642 = vpop.f32.mrf.mxu0
  %v643 = vadd.f32 0.0, %v642
  %v644 = vpop.f32.mrf.mxu0
  %645 = vmatprep.mubr.f32.mxu0 0.0
  %646 = vmatmul.mubr.f32.gmra.mxu0 %v574
  %v647 = vpop.f32.mrf.mxu0
  %v648 = vadd.f32 0.0, %v647
  %v649 = vpop.f32.mrf.mxu0
  %650 = vdwg.mxu0
  %v652 = vsel %vm202, %v223, 0
  %v655 = vsel %vm202, %v224, 0
  %657 = vmatprep.subr.mxu0 0.0
  %658 = vmatpush1.msra.mxu0 0.0
  %659 = vmatprep.subr.mxu0 0.0
  %660 = vmatpush1.msra.mxu0 0.0
  %661 = vmatprep.subr.mxu0 0.0
  %662 = vmatpush1.msra.mxu0 0.0
  %663 = vmatprep.subr.mxu0 0.0
  %664 = vmatpush1.msra.mxu0 0.0
  %665 = vmatprep.subr.mxu0 0.0
  %666 = vmatpush1.msra.mxu0 0.0
  %667 = vmatprep.subr.mxu0 0.0
  %668 = vmatpush1.msra.mxu0 0.0
  %669 = vmatprep.subr.mxu0 0.0
  %670 = vmatpush1.msra.mxu0 0.0
  %671 = vmatprep.subr.mxu0 0.0
  %672 = vmatpush1.msra.mxu0 0.0
  %673 = vmatprep.subr.mxu0 0.0
  %674 = vmatpush1.msra.mxu0 0.0
  %675 = vmatprep.subr.mxu0 0.0
  %676 = vmatpush1.msra.mxu0 0.0
  %677 = vmatprep.subr.mxu0 0.0
  %678 = vmatpush1.msra.mxu0 0.0
  %679 = vmatprep.subr.mxu0 0.0
  %680 = vmatpush1.msra.mxu0 0.0
  %681 = vmatprep.subr.mxu0 0.0
  %682 = vmatpush1.msra.mxu0 0.0
  %683 = vmatprep.subr.mxu0 0.0
  %684 = vmatpush1.msra.mxu0 0.0
  %685 = vmatprep.subr.mxu0 0.0
  %686 = vmatpush1.msra.mxu0 %v302
  %687 = vmatprep.subr.mxu0 0.0
  %688 = vmatpush1.msra.mxu0 %v297
  %689 = vmatprep.subr.mxu0 0.0
  %690 = vmatpush2.msra.mxu0 0.0
  %691 = vmatprep.subr.mxu0 0.0
  %692 = vmatpush2.msra.mxu0 0.0
  %693 = vmatprep.subr.mxu0 0.0
  %694 = vmatpush2.msra.mxu0 0.0
  %695 = vmatprep.subr.mxu0 0.0
  %696 = vmatpush2.msra.mxu0 0.0
  %697 = vmatprep.subr.mxu0 0.0
  %698 = vmatpush2.msra.mxu0 0.0
  %699 = vmatprep.subr.mxu0 0.0
  %700 = vmatpush2.msra.mxu0 0.0
  %701 = vmatprep.subr.mxu0 0.0
  %702 = vmatpush2.msra.mxu0 0.0
  %703 = vmatprep.subr.mxu0 0.0
  %704 = vmatpush2.msra.mxu0 0.0
  %705 = vmatprep.subr.mxu0 0.0
  %706 = vmatpush2.msra.mxu0 0.0
  %707 = vmatprep.subr.mxu0 0.0
  %708 = vmatpush2.msra.mxu0 0.0
  %709 = vmatprep.subr.mxu0 0.0
  %710 = vmatpush2.msra.mxu0 0.0
  %711 = vmatprep.subr.mxu0 0.0
  %712 = vmatpush2.msra.mxu0 0.0
  %713 = vmatprep.subr.mxu0 0.0
  %714 = vmatpush2.msra.mxu0 0.0
  %715 = vmatprep.subr.mxu0 0.0
  %716 = vmatpush2.msra.mxu0 0.0
  %717 = vmatprep.subr.mxu0 0.0
  %718 = vmatpush2.msra.mxu0 0.0
  %719 = vmatprep.subr.mxu0 0.0
  %720 = vmatpush2.msra.mxu0 0.0
  %721 = vmatprep.mubr.f32.mxu0 0.0
  %722 = vmatmul.mubr.f32.gmra.mxu0 %v652
  %v723 = vpop.f32.mrf.mxu0
  %v724 = vadd.f32 %v643, %v723
  %v725 = vpop.f32.mrf.mxu0
  %726 = vmatprep.mubr.f32.mxu0 0.0
  %727 = vmatmul.mubr.f32.gmra.mxu0 %v655
  %v728 = vpop.f32.mrf.mxu0
  %v729 = vadd.f32 %v648, %v728
  %v730 = vpop.f32.mrf.mxu0
  %731 = vdwg.mxu0
  %s732 = scalar_lea.vmem %s2, 80
  %v733 = vld [vmem:[%s732] sm:$0xff]
  %v734 = vld [vmem:[%s732 + $0x8] sm:$0xff]
  %v735 = vld [vmem:[%s732 + $0x10] sm:$0xff]
  %v736 = vld [vmem:[%s732 + $0x18] sm:$0xff]
  %v737 = vld [vmem:[%s732 + $0x20] sm:$0xff]
  %738 = vmatprep.subr.mxu0 0.0
  %739 = vmatpush1.msra.mxu0 0.0
  %740 = vmatprep.subr.mxu0 0.0
  %741 = vmatpush1.msra.mxu0 0.0
  %742 = vmatprep.subr.mxu0 0.0
  %743 = vmatpush1.msra.mxu0 0.0
  %744 = vmatprep.subr.mxu0 0.0
  %745 = vmatpush1.msra.mxu0 0.0
  %746 = vmatprep.subr.mxu0 0.0
  %747 = vmatpush1.msra.mxu0 0.0
  %748 = vmatprep.subr.mxu0 0.0
  %749 = vmatpush1.msra.mxu0 0.0
  %750 = vmatprep.subr.mxu0 0.0
  %751 = vmatpush1.msra.mxu0 0.0
  %752 = vmatprep.subr.mxu0 0.0
  %753 = vmatpush1.msra.mxu0 0.0
  %754 = vmatprep.subr.mxu0 0.0
  %755 = vmatpush1.msra.mxu0 0.0
  %756 = vmatprep.subr.mxu0 0.0
  %757 = vmatpush1.msra.mxu0 0.0
  %758 = vmatprep.subr.mxu0 0.0
  %759 = vmatpush1.msra.mxu0 0.0
  %760 = vmatprep.subr.mxu0 0.0
  %761 = vmatpush1.msra.mxu0 %v737
  %762 = vmatprep.subr.mxu0 0.0
  %763 = vmatpush1.msra.mxu0 %v736
  %764 = vmatprep.subr.mxu0 0.0
  %765 = vmatpush1.msra.mxu0 %v735
  %766 = vmatprep.subr.mxu0 0.0
  %767 = vmatpush1.msra.mxu0 %v734
  %768 = vmatprep.subr.mxu0 0.0
  %769 = vmatpush1.msra.mxu0 %v733
  %770 = vmatprep.subr.mxu0 0.0
  %771 = vmatpush2.msra.mxu0 0.0
  %772 = vmatprep.subr.mxu0 0.0
  %773 = vmatpush2.msra.mxu0 0.0
  %774 = vmatprep.subr.mxu0 0.0
  %775 = vmatpush2.msra.mxu0 0.0
  %776 = vmatprep.subr.mxu0 0.0
  %777 = vmatpush2.msra.mxu0 0.0
  %778 = vmatprep.subr.mxu0 0.0
  %779 = vmatpush2.msra.mxu0 0.0
  %780 = vmatprep.subr.mxu0 0.0
  %781 = vmatpush2.msra.mxu0 0.0
  %782 = vmatprep.subr.mxu0 0.0
  %783 = vmatpush2.msra.mxu0 0.0
  %784 = vmatprep.subr.mxu0 0.0
  %785 = vmatpush2.msra.mxu0 0.0
  %786 = vmatprep.subr.mxu0 0.0
  %787 = vmatpush2.msra.mxu0 0.0
  %788 = vmatprep.subr.mxu0 0.0
  %789 = vmatpush2.msra.mxu0 0.0
  %790 = vmatprep.subr.mxu0 0.0
  %791 = vmatpush2.msra.mxu0 0.0
  %792 = vmatprep.subr.mxu0 0.0
  %793 = vmatpush2.msra.mxu0 0.0
  %794 = vmatprep.subr.mxu0 0.0
  %795 = vmatpush2.msra.mxu0 0.0
  %796 = vmatprep.subr.mxu0 0.0
  %797 = vmatpush2.msra.mxu0 0.0
  %798 = vmatprep.subr.mxu0 0.0
  %799 = vmatpush2.msra.mxu0 0.0
  %800 = vmatprep.subr.mxu0 0.0
  %801 = vmatpush2.msra.mxu0 0.0
  %802 = vmatprep.mubr.f32.mxu0 0.0
  %803 = vmatmul.mubr.f32.gmra.mxu0 %v41
  %v804 = vpop.f32.mrf.mxu0
  %v805 = vadd.f32 0.0, %v804
  %v806 = vpop.f32.mrf.mxu0
  %807 = vmatprep.mubr.f32.mxu0 0.0
  %808 = vmatmul.mubr.f32.gmra.mxu0 %v44
  %v809 = vpop.f32.mrf.mxu0
  %v810 = vadd.f32 0.0, %v809
  %v811 = vpop.f32.mrf.mxu0
  %812 = vdwg.mxu0
  %v814 = vsel %vm39, %v805, 0
  %v817 = vsel %vm39, %v810, 0
  %819 = vmatprep.subr.mxu0 0.0
  %820 = vmatpush1.xpose.msra.mxu0 0.0
  %821 = vmatprep.subr.mxu0 0.0
  %822 = vmatpush1.xpose.msra.mxu0 0.0
  %823 = vmatprep.subr.mxu0 0.0
  %824 = vmatpush1.xpose.msra.mxu0 0.0
  %825 = vmatprep.subr.mxu0 0.0
  %826 = vmatpush1.xpose.msra.mxu0 0.0
  %827 = vmatprep.subr.mxu0 0.0
  %828 = vmatpush1.xpose.msra.mxu0 0.0
  %829 = vmatprep.subr.mxu0 0.0
  %830 = vmatpush1.xpose.msra.mxu0 0.0
  %831 = vmatprep.subr.mxu0 0.0
  %832 = vmatpush1.xpose.msra.mxu0 0.0
  %833 = vmatprep.subr.mxu0 0.0
  %834 = vmatpush1.xpose.msra.mxu0 0.0
  %835 = vmatprep.subr.mxu0 0.0
  %836 = vmatpush1.xpose.msra.mxu0 0.0
  %837 = vmatprep.subr.mxu0 0.0
  %838 = vmatpush1.xpose.msra.mxu0 0.0
  %839 = vmatprep.subr.mxu0 0.0
  %840 = vmatpush1.xpose.msra.mxu0 0.0
  %841 = vmatprep.subr.mxu0 0.0
  %842 = vmatpush1.xpose.msra.mxu0 0.0
  %843 = vmatprep.subr.mxu0 0.0
  %844 = vmatpush1.xpose.msra.mxu0 0.0
  %845 = vmatprep.subr.mxu0 0.0
  %846 = vmatpush1.xpose.msra.mxu0 0.0
  %847 = vmatprep.subr.mxu0 0.0
  %848 = vmatpush1.xpose.msra.mxu0 %v44
  %849 = vmatprep.subr.mxu0 0.0
  %850 = vmatpush1.xpose.msra.mxu0 %v41
  %851 = vmatprep.subr.mxu0 0.0
  %852 = vmatpush2.xpose.msra.mxu0 0.0
  %853 = vmatprep.subr.mxu0 0.0
  %854 = vmatpush2.xpose.msra.mxu0 0.0
  %855 = vmatprep.subr.mxu0 0.0
  %856 = vmatpush2.xpose.msra.mxu0 0.0
  %857 = vmatprep.subr.mxu0 0.0
  %858 = vmatpush2.xpose.msra.mxu0 0.0
  %859 = vmatprep.subr.mxu0 0.0
  %860 = vmatpush2.xpose.msra.mxu0 0.0
  %861 = vmatprep.subr.mxu0 0.0
  %862 = vmatpush2.xpose.msra.mxu0 0.0
  %863 = vmatprep.subr.mxu0 0.0
  %864 = vmatpush2.xpose.msra.mxu0 0.0
  %865 = vmatprep.subr.mxu0 0.0
  %866 = vmatpush2.xpose.msra.mxu0 0.0
  %867 = vmatprep.subr.mxu0 0.0
  %868 = vmatpush2.xpose.msra.mxu0 0.0
  %869 = vmatprep.subr.mxu0 0.0
  %870 = vmatpush2.xpose.msra.mxu0 0.0
  %871 = vmatprep.subr.mxu0 0.0
  %872 = vmatpush2.xpose.msra.mxu0 0.0
  %873 = vmatprep.subr.mxu0 0.0
  %874 = vmatpush2.xpose.msra.mxu0 0.0
  %875 = vmatprep.subr.mxu0 0.0
  %876 = vmatpush2.xpose.msra.mxu0 0.0
  %877 = vmatprep.subr.mxu0 0.0
  %878 = vmatpush2.xpose.msra.mxu0 0.0
  %879 = vmatprep.subr.mxu0 0.0
  %880 = vmatpush2.xpose.msra.mxu0 0.0
  %881 = vmatprep.subr.mxu0 0.0
  %882 = vmatpush2.xpose.msra.mxu0 0.0
  %883 = vmatprep.mubr.f32.mxu0 0.0
  %884 = vmatmul.mubr.f32.gmra.mxu0 %v814
  %v885 = vpop.f32.mrf.mxu0
  %v886 = vadd.f32 %v31, %v885
  %v887 = vpop.f32.mrf.mxu0
  %888 = vmatprep.mubr.f32.mxu0 0.0
  %889 = vmatmul.mubr.f32.gmra.mxu0 %v817
  %v890 = vpop.f32.mrf.mxu0
  %v891 = vadd.f32 %v32, %v890
  %v892 = vpop.f32.mrf.mxu0
  %893 = vdwg.mxu0
  %v894 = vsel %vm202, %v886, -inf
  %895 = vmax.xlane.f32.xlu0 %v894
  %v896 = vpop.xlane.xlu0 %895
  %v897 = vsel %vm202, %v891, -inf
  %898 = vmax.xlane.f32.xlu0 %v897
  %v899 = vpop.xlane.xlu0 %898
  %v900 = vsub.f32 %v886, %v896
  %v901 = vsub.f32 %v891, %v899
  %v902 = vmul.f32 %v900, 1.442695
  %v903 = vpow.pop %v902
  %v904 = vmul.f32 %v901, 1.442695
  %v905 = vpow.pop %v904
  %v906 = vsel %vm202, %v903, 0.0
  %907 = vadd.xlane.f32.xlu0 %v906
  %v908 = vpop.xlane.xlu0 %907
  %v909 = vsel %vm202, %v905, 0.0
  %910 = vadd.xlane.f32.xlu0 %v909
  %v911 = vpop.xlane.xlu0 %910
  %v912 = vrcp.pop %v908
  %v913 = vrcp.pop %v911
  %v914 = vmul.f32 %v903, %v912
  %v915 = vmul.f32 %v905, %v913
  %s916 = scalar_lea.vmem %s3, 80
  %v917 = vld [vmem:[%s916] sm:$0xff]
  %v918 = vld [vmem:[%s916 + $0x8] sm:$0xff]
  %v919 = vld [vmem:[%s916 + $0x10] sm:$0xff]
  %v920 = vld [vmem:[%s916 + $0x18] sm:$0xff]
  %v921 = vld [vmem:[%s916 + $0x20] sm:$0xff]
  %922 = vmatprep.subr.mxu0 0.0
  %923 = vmatpush1.msra.mxu0 0.0
  %924 = vmatprep.subr.mxu0 0.0
  %925 = vmatpush1.msra.mxu0 0.0
  %926 = vmatprep.subr.mxu0 0.0
  %927 = vmatpush1.msra.mxu0 0.0
  %928 = vmatprep.subr.mxu0 0.0
  %929 = vmatpush1.msra.mxu0 0.0
  %930 = vmatprep.subr.mxu0 0.0
  %931 = vmatpush1.msra.mxu0 0.0
  %932 = vmatprep.subr.mxu0 0.0
  %933 = vmatpush1.msra.mxu0 0.0
  %934 = vmatprep.subr.mxu0 0.0
  %935 = vmatpush1.msra.mxu0 0.0
  %936 = vmatprep.subr.mxu0 0.0
  %937 = vmatpush1.msra.mxu0 0.0
  %938 = vmatprep.subr.mxu0 0.0
  %939 = vmatpush1.msra.mxu0 0.0
  %940 = vmatprep.subr.mxu0 0.0
  %941 = vmatpush1.msra.mxu0 0.0
  %942 = vmatprep.subr.mxu0 0.0
  %943 = vmatpush1.msra.mxu0 0.0
  %944 = vmatprep.subr.mxu0 0.0
  %945 = vmatpush1.msra.mxu0 %v921
  %946 = vmatprep.subr.mxu0 0.0
  %947 = vmatpush1.msra.mxu0 %v920
  %948 = vmatprep.subr.mxu0 0.0
  %949 = vmatpush1.msra.mxu0 %v919
  %950 = vmatprep.subr.mxu0 0.0
  %951 = vmatpush1.msra.mxu0 %v918
  %952 = vmatprep.subr.mxu0 0.0
  %953 = vmatpush1.msra.mxu0 %v917
  %954 = vmatprep.subr.mxu0 0.0
  %955 = vmatpush2.msra.mxu0 0.0
  %956 = vmatprep.subr.mxu0 0.0
  %957 = vmatpush2.msra.mxu0 0.0
  %958 = vmatprep.subr.mxu0 0.0
  %959 = vmatpush2.msra.mxu0 0.0
  %960 = vmatprep.subr.mxu0 0.0
  %961 = vmatpush2.msra.mxu0 0.0
  %962 = vmatprep.subr.mxu0 0.0
  %963 = vmatpush2.msra.mxu0 0.0
  %964 = vmatprep.subr.mxu0 0.0
  %965 = vmatpush2.msra.mxu0 0.0
  %966 = vmatprep.subr.mxu0 0.0
  %967 = vmatpush2.msra.mxu0 0.0
  %968 = vmatprep.subr.mxu0 0.0
  %969 = vmatpush2.msra.mxu0 0.0
  %970 = vmatprep.subr.mxu0 0.0
  %971 = vmatpush2.msra.mxu0 0.0
  %972 = vmatprep.subr.mxu0 0.0
  %973 = vmatpush2.msra.mxu0 0.0
  %974 = vmatprep.subr.mxu0 0.0
  %975 = vmatpush2.msra.mxu0 0.0
  %976 = vmatprep.subr.mxu0 0.0
  %977 = vmatpush2.msra.mxu0 0.0
  %978 = vmatprep.subr.mxu0 0.0
  %979 = vmatpush2.msra.mxu0 0.0
  %980 = vmatprep.subr.mxu0 0.0
  %981 = vmatpush2.msra.mxu0 0.0
  %982 = vmatprep.subr.mxu0 0.0
  %983 = vmatpush2.msra.mxu0 0.0
  %984 = vmatprep.subr.mxu0 0.0
  %985 = vmatpush2.msra.mxu0 0.0
  %986 = vmatprep.mubr.f32.mxu0 0.0
  %987 = vmatmul.mubr.f32.gmra.mxu0 %v41
  %v988 = vpop.f32.mrf.mxu0
  %v989 = vadd.f32 0.0, %v988
  %v990 = vpop.f32.mrf.mxu0
  %991 = vmatprep.mubr.f32.mxu0 0.0
  %992 = vmatmul.mubr.f32.gmra.mxu0 %v44
  %v993 = vpop.f32.mrf.mxu0
  %v994 = vadd.f32 0.0, %v993
  %v995 = vpop.f32.mrf.mxu0
  %996 = vdwg.mxu0
  %v998 = vsel %vm202, %v914, 0
  %v1001 = vsel %vm202, %v915, 0
  %1003 = vmatprep.subr.mxu0 0.0
  %1004 = vmatpush1.msra.mxu0 0.0
  %1005 = vmatprep.subr.mxu0 0.0
  %1006 = vmatpush1.msra.mxu0 0.0
  %1007 = vmatprep.subr.mxu0 0.0
  %1008 = vmatpush1.msra.mxu0 0.0
  %1009 = vmatprep.subr.mxu0 0.0
  %1010 = vmatpush1.msra.mxu0 0.0
  %1011 = vmatprep.subr.mxu0 0.0
  %1012 = vmatpush1.msra.mxu0 0.0
  %1013 = vmatprep.subr.mxu0 0.0
  %1014 = vmatpush1.msra.mxu0 0.0
  %1015 = vmatprep.subr.mxu0 0.0
  %1016 = vmatpush1.msra.mxu0 0.0
  %1017 = vmatprep.subr.mxu0 0.0
  %1018 = vmatpush1.msra.mxu0 0.0
  %1019 = vmatprep.subr.mxu0 0.0
  %1020 = vmatpush1.msra.mxu0 0.0
  %1021 = vmatprep.subr.mxu0 0.0
  %1022 = vmatpush1.msra.mxu0 0.0
  %1023 = vmatprep.subr.mxu0 0.0
  %1024 = vmatpush1.msra.mxu0 0.0
  %1025 = vmatprep.subr.mxu0 0.0
  %1026 = vmatpush1.msra.mxu0 0.0
  %1027 = vmatprep.subr.mxu0 0.0
  %1028 = vmatpush1.msra.mxu0 0.0
  %1029 = vmatprep.subr.mxu0 0.0
  %1030 = vmatpush1.msra.mxu0 0.0
  %1031 = vmatprep.subr.mxu0 0.0
  %1032 = vmatpush1.msra.mxu0 %v994
  %1033 = vmatprep.subr.mxu0 0.0
  %1034 = vmatpush1.msra.mxu0 %v989
  %1035 = vmatprep.subr.mxu0 0.0
  %1036 = vmatpush2.msra.mxu0 0.0
  %1037 = vmatprep.subr.mxu0 0.0
  %1038 = vmatpush2.msra.mxu0 0.0
  %1039 = vmatprep.subr.mxu0 0.0
  %1040 = vmatpush2.msra.mxu0 0.0
  %1041 = vmatprep.subr.mxu0 0.0
  %1042 = vmatpush2.msra.mxu0 0.0
  %1043 = vmatprep.subr.mxu0 0.0
  %1044 = vmatpush2.msra.mxu0 0.0
  %1045 = vmatprep.subr.mxu0 0.0
  %1046 = vmatpush2.msra.mxu0 0.0
  %1047 = vmatprep.subr.mxu0 0.0
  %1048 = vmatpush2.msra.mxu0 0.0
  %1049 = vmatprep.subr.mxu0 0.0
  %1050 = vmatpush2.msra.mxu0 0.0
  %1051 = vmatprep.subr.mxu0 0.0
  %1052 = vmatpush2.msra.mxu0 0.0
  %1053 = vmatprep.subr.mxu0 0.0
  %1054 = vmatpush2.msra.mxu0 0.0
  %1055 = vmatprep.subr.mxu0 0.0
  %1056 = vmatpush2.msra.mxu0 0.0
  %1057 = vmatprep.subr.mxu0 0.0
  %1058 = vmatpush2.msra.mxu0 0.0
  %1059 = vmatprep.subr.mxu0 0.0
  %1060 = vmatpush2.msra.mxu0 0.0
  %1061 = vmatprep.subr.mxu0 0.0
  %1062 = vmatpush2.msra.mxu0 0.0
  %1063 = vmatprep.subr.mxu0 0.0
  %1064 = vmatpush2.msra.mxu0 0.0
  %1065 = vmatprep.subr.mxu0 0.0
  %1066 = vmatpush2.msra.mxu0 0.0
  %1067 = vmatprep.mubr.f32.mxu0 0.0
  %1068 = vmatmul.mubr.f32.gmra.mxu0 %v998
  %v1069 = vpop.f32.mrf.mxu0
  %v1070 = vadd.f32 0.0, %v1069
  %v1071 = vpop.f32.mrf.mxu0
  %1072 = vmatprep.mubr.f32.mxu0 0.0
  %1073 = vmatmul.mubr.f32.gmra.mxu0 %v1001
  %v1074 = vpop.f32.mrf.mxu0
  %v1075 = vadd.f32 0.0, %v1074
  %v1076 = vpop.f32.mrf.mxu0
  %1077 = vdwg.mxu0
  %v1078 = vadd.f32 %v724, %v1070
  %v1079 = vadd.f32 %v729, %v1075
  %s1080 = scalar_lea.vmem %s2, 120
  %v1081 = vld [vmem:[%s1080] sm:$0xff]
  %v1082 = vld [vmem:[%s1080 + $0x8] sm:$0xff]
  %v1083 = vld [vmem:[%s1080 + $0x10] sm:$0xff]
  %v1084 = vld [vmem:[%s1080 + $0x18] sm:$0xff]
  %v1085 = vld [vmem:[%s1080 + $0x20] sm:$0xff]
  %1086 = vmatprep.subr.mxu0 0.0
  %1087 = vmatpush1.msra.mxu0 0.0
  %1088 = vmatprep.subr.mxu0 0.0
  %1089 = vmatpush1.msra.mxu0 0.0
  %1090 = vmatprep.subr.mxu0 0.0
  %1091 = vmatpush1.msra.mxu0 0.0
  %1092 = vmatprep.subr.mxu0 0.0
  %1093 = vmatpush1.msra.mxu0 0.0
  %1094 = vmatprep.subr.mxu0 0.0
  %1095 = vmatpush1.msra.mxu0 0.0
  %1096 = vmatprep.subr.mxu0 0.0
  %1097 = vmatpush1.msra.mxu0 0.0
  %1098 = vmatprep.subr.mxu0 0.0
  %1099 = vmatpush1.msra.mxu0 0.0
  %1100 = vmatprep.subr.mxu0 0.0
  %1101 = vmatpush1.msra.mxu0 0.0
  %1102 = vmatprep.subr.mxu0 0.0
  %1103 = vmatpush1.msra.mxu0 0.0
  %1104 = vmatprep.subr.mxu0 0.0
  %1105 = vmatpush1.msra.mxu0 0.0
  %1106 = vmatprep.subr.mxu0 0.0
  %1107 = vmatpush1.msra.mxu0 0.0
  %1108 = vmatprep.subr.mxu0 0.0
  %1109 = vmatpush1.msra.mxu0 %v1085
  %1110 = vmatprep.subr.mxu0 0.0
  %1111 = vmatpush1.msra.mxu0 %v1084
  %1112 = vmatprep.subr.mxu0 0.0
  %1113 = vmatpush1.msra.mxu0 %v1083
  %1114 = vmatprep.subr.mxu0 0.0
  %1115 = vmatpush1.msra.mxu0 %v1082
  %1116 = vmatprep.subr.mxu0 0.0
  %1117 = vmatpush1.msra.mxu0 %v1081
  %1118 = vmatprep.subr.mxu0 0.0
  %1119 = vmatpush2.msra.mxu0 0.0
  %1120 = vmatprep.subr.mxu0 0.0
  %1121 = vmatpush2.msra.mxu0 0.0
  %1122 = vmatprep.subr.mxu0 0.0
  %1123 = vmatpush2.msra.mxu0 0.0
  %1124 = vmatprep.subr.mxu0 0.0
  %1125 = vmatpush2.msra.mxu0 0.0
  %1126 = vmatprep.subr.mxu0 0.0
  %1127 = vmatpush2.msra.mxu0 0.0
  %1128 = vmatprep.subr.mxu0 0.0
  %1129 = vmatpush2.msra.mxu0 0.0
  %1130 = vmatprep.subr.mxu0 0.0
  %1131 = vmatpush2.msra.mxu0 0.0
  %1132 = vmatprep.subr.mxu0 0.0
  %1133 = vmatpush2.msra.mxu0 0.0
  %1134 = vmatprep.subr.mxu0 0.0
  %1135 = vmatpush2.msra.mxu0 0.0
  %1136 = vmatprep.subr.mxu0 0.0
  %1137 = vmatpush2.msra.mxu0 0.0
  %1138 = vmatprep.subr.mxu0 0.0
  %1139 = vmatpush2.msra.mxu0 0.0
  %1140 = vmatprep.subr.mxu0 0.0
  %1141 = vmatpush2.msra.mxu0 0.0
  %1142 = vmatprep.subr.mxu0 0.0
  %1143 = vmatpush2.msra.mxu0 0.0
  %1144 = vmatprep.subr.mxu0 0.0
  %1145 = vmatpush2.msra.mxu0 0.0
  %1146 = vmatprep.subr.mxu0 0.0
  %1147 = vmatpush2.msra.mxu0 0.0
  %1148 = vmatprep.subr.mxu0 0.0
  %1149 = vmatpush2.msra.mxu0 0.0
  %1150 = vmatprep.mubr.f32.mxu0 0.0
  %1151 = vmatmul.mubr.f32.gmra.mxu0 %v41
  %v1152 = vpop.f32.mrf.mxu0
  %v1153 = vadd.f32 0.0, %v1152
  %v1154 = vpop.f32.mrf.mxu0
  %1155 = vmatprep.mubr.f32.mxu0 0.0
  %1156 = vmatmul.mubr.f32.gmra.mxu0 %v44
  %v1157 = vpop.f32.mrf.mxu0
  %v1158 = vadd.f32 0.0, %v1157
  %v1159 = vpop.f32.mrf.mxu0
  %1160 = vdwg.mxu0
  %v1162 = vsel %vm39, %v1153, 0
  %v1165 = vsel %vm39, %v1158, 0
  %1167 = vmatprep.subr.mxu0 0.0
  %1168 = vmatpush1.xpose.msra.mxu0 0.0
  %1169 = vmatprep.subr.mxu0 0.0
  %1170 = vmatpush1.xpose.msra.mxu0 0.0
  %1171 = vmatprep.subr.mxu0 0.0
  %1172 = vmatpush1.xpose.msra.mxu0 0.0
  %1173 = vmatprep.subr.mxu0 0.0
  %1174 = vmatpush1.xpose.msra.mxu0 0.0
  %1175 = vmatprep.subr.mxu0 0.0
  %1176 = vmatpush1.xpose.msra.mxu0 0.0
  %1177 = vmatprep.subr.mxu0 0.0
  %1178 = vmatpush1.xpose.msra.mxu0 0.0
  %1179 = vmatprep.subr.mxu0 0.0
  %1180 = vmatpush1.xpose.msra.mxu0 0.0
  %1181 = vmatprep.subr.mxu0 0.0
  %1182 = vmatpush1.xpose.msra.mxu0 0.0
  %1183 = vmatprep.subr.mxu0 0.0
  %1184 = vmatpush1.xpose.msra.mxu0 0.0
  %1185 = vmatprep.subr.mxu0 0.0
  %1186 = vmatpush1.xpose.msra.mxu0 0.0
  %1187 = vmatprep.subr.mxu0 0.0
  %1188 = vmatpush1.xpose.msra.mxu0 0.0
  %1189 = vmatprep.subr.mxu0 0.0
  %1190 = vmatpush1.xpose.msra.mxu0 0.0
  %1191 = vmatprep.subr.mxu0 0.0
  %1192 = vmatpush1.xpose.msra.mxu0 0.0
  %1193 = vmatprep.subr.mxu0 0.0
  %1194 = vmatpush1.xpose.msra.mxu0 0.0
  %1195 = vmatprep.subr.mxu0 0.0
  %1196 = vmatpush1.xpose.msra.mxu0 %v44
  %1197 = vmatprep.subr.mxu0 0.0
  %1198 = vmatpush1.xpose.msra.mxu0 %v41
  %1199 = vmatprep.subr.mxu0 0.0
  %1200 = vmatpush2.xpose.msra.mxu0 0.0
  %1201 = vmatprep.subr.mxu0 0.0
  %1202 = vmatpush2.xpose.msra.mxu0 0.0
  %1203 = vmatprep.subr.mxu0 0.0
  %1204 = vmatpush2.xpose.msra.mxu0 0.0
  %1205 = vmatprep.subr.mxu0 0.0
  %1206 = vmatpush2.xpose.msra.mxu0 0.0
  %1207 = vmatprep.subr.mxu0 0.0
  %1208 = vmatpush2.xpose.msra.mxu0 0.0
  %1209 = vmatprep.subr.mxu0 0.0
  %1210 = vmatpush2.xpose.msra.mxu0 0.0
  %1211 = vmatprep.subr.mxu0 0.0
  %1212 = vmatpush2.xpose.msra.mxu0 0.0
  %1213 = vmatprep.subr.mxu0 0.0
  %1214 = vmatpush2.xpose.msra.mxu0 0.0
  %1215 = vmatprep.subr.mxu0 0.0
  %1216 = vmatpush2.xpose.msra.mxu0 0.0
  %1217 = vmatprep.subr.mxu0 0.0
  %1218 = vmatpush2.xpose.msra.mxu0 0.0
  %1219 = vmatprep.subr.mxu0 0.0
  %1220 = vmatpush2.xpose.msra.mxu0 0.0
  %1221 = vmatprep.subr.mxu0 0.0
  %1222 = vmatpush2.xpose.msra.mxu0 0.0
  %1223 = vmatprep.subr.mxu0 0.0
  %1224 = vmatpush2.xpose.msra.mxu0 0.0
  %1225 = vmatprep.subr.mxu0 0.0
  %1226 = vmatpush2.xpose.msra.mxu0 0.0
  %1227 = vmatprep.subr.mxu0 0.0
  %1228 = vmatpush2.xpose.msra.mxu0 0.0
  %1229 = vmatprep.subr.mxu0 0.0
  %1230 = vmatpush2.xpose.msra.mxu0 0.0
  %1231 = vmatprep.mubr.f32.mxu0 0.0
  %1232 = vmatmul.mubr.f32.gmra.mxu0 %v1162
  %v1233 = vpop.f32.mrf.mxu0
  %v1234 = vadd.f32 %v31, %v1233
  %v1235 = vpop.f32.mrf.mxu0
  %1236 = vmatprep.mubr.f32.mxu0 0.0
  %1237 = vmatmul.mubr.f32.gmra.mxu0 %v1165
  %v1238 = vpop.f32.mrf.mxu0
  %v1239 = vadd.f32 %v32, %v1238
  %v1240 = vpop.f32.mrf.mxu0
  %1241 = vdwg.mxu0
  %v1242 = vsel %vm202, %v1234, -inf
  %1243 = vmax.xlane.f32.xlu0 %v1242
  %v1244 = vpop.xlane.xlu0 %1243
  %v1245 = vsel %vm202, %v1239, -inf
  %1246 = vmax.xlane.f32.xlu0 %v1245
  %v1247 = vpop.xlane.xlu0 %1246
  %v1248 = vsub.f32 %v1234, %v1244
  %v1249 = vsub.f32 %v1239, %v1247
  %v1250 = vmul.f32 %v1248, 1.442695
  %v1251 = vpow.pop %v1250
  %v1252 = vmul.f32 %v1249, 1.442695
  %v1253 = vpow.pop %v1252
  %v1254 = vsel %vm202, %v1251, 0.0
  %1255 = vadd.xlane.f32.xlu0 %v1254
  %v1256 = vpop.xlane.xlu0 %1255
  %v1257 = vsel %vm202, %v1253, 0.0
  %1258 = vadd.xlane.f32.xlu0 %v1257
  %v1259 = vpop.xlane.xlu0 %1258
  %v1260 = vrcp.pop %v1256
  %v1261 = vrcp.pop %v1259
  %v1262 = vmul.f32 %v1251, %v1260
  %v1263 = vmul.f32 %v1253, %v1261
  %s1264 = scalar_lea.vmem %s3, 120
  %v1265 = vld [vmem:[%s1264] sm:$0xff]
  %v1266 = vld [vmem:[%s1264 + $0x8] sm:$0xff]
  %v1267 = vld [vmem:[%s1264 + $0x10] sm:$0xff]
  %v1268 = vld [vmem:[%s1264 + $0x18] sm:$0xff]
  %v1269 = vld [vmem:[%s1264 + $0x20] sm:$0xff]
  %1270 = vmatprep.subr.mxu0 0.0
  %1271 = vmatpush1.msra.mxu0 0.0
  %1272 = vmatprep.subr.mxu0 0.0
  %1273 = vmatpush1.msra.mxu0 0.0
  %1274 = vmatprep.subr.mxu0 0.0
  %1275 = vmatpush1.msra.mxu0 0.0
  %1276 = vmatprep.subr.mxu0 0.0
  %1277 = vmatpush1.msra.mxu0 0.0
  %1278 = vmatprep.subr.mxu0 0.0
  %1279 = vmatpush1.msra.mxu0 0.0
  %1280 = vmatprep.subr.mxu0 0.0
  %1281 = vmatpush1.msra.mxu0 0.0
  %1282 = vmatprep.subr.mxu0 0.0
  %1283 = vmatpush1.msra.mxu0 0.0
  %1284 = vmatprep.subr.mxu0 0.0
  %1285 = vmatpush1.msra.mxu0 0.0
  %1286 = vmatprep.subr.mxu0 0.0
  %1287 = vmatpush1.msra.mxu0 0.0
  %1288 = vmatprep.subr.mxu0 0.0
  %1289 = vmatpush1.msra.mxu0 0.0
  %1290 = vmatprep.subr.mxu0 0.0
  %1291 = vmatpush1.msra.mxu0 0.0
  %1292 = vmatprep.subr.mxu0 0.0
  %1293 = vmatpush1.msra.mxu0 %v1269
  %1294 = vmatprep.subr.mxu0 0.0
  %1295 = vmatpush1.msra.mxu0 %v1268
  %1296 = vmatprep.subr.mxu0 0.0
  %1297 = vmatpush1.msra.mxu0 %v1267
  %1298 = vmatprep.subr.mxu0 0.0
  %1299 = vmatpush1.msra.mxu0 %v1266
  %1300 = vmatprep.subr.mxu0 0.0
  %1301 = vmatpush1.msra.mxu0 %v1265
  %1302 = vmatprep.subr.mxu0 0.0
  %1303 = vmatpush2.msra.mxu0 0.0
  %1304 = vmatprep.subr.mxu0 0.0
  %1305 = vmatpush2.msra.mxu0 0.0
  %1306 = vmatprep.subr.mxu0 0.0
  %1307 = vmatpush2.msra.mxu0 0.0
  %1308 = vmatprep.subr.mxu0 0.0
  %1309 = vmatpush2.msra.mxu0 0.0
  %1310 = vmatprep.subr.mxu0 0.0
  %1311 = vmatpush2.msra.mxu0 0.0
  %1312 = vmatprep.subr.mxu0 0.0
  %1313 = vmatpush2.msra.mxu0 0.0
  %1314 = vmatprep.subr.mxu0 0.0
  %1315 = vmatpush2.msra.mxu0 0.0
  %1316 = vmatprep.subr.mxu0 0.0
  %1317 = vmatpush2.msra.mxu0 0.0
  %1318 = vmatprep.subr.mxu0 0.0
  %1319 = vmatpush2.msra.mxu0 0.0
  %1320 = vmatprep.subr.mxu0 0.0
  %1321 = vmatpush2.msra.mxu0 0.0
  %1322 = vmatprep.subr.mxu0 0.0
  %1323 = vmatpush2.msra.mxu0 0.0
  %1324 = vmatprep.subr.mxu0 0.0
  %1325 = vmatpush2.msra.mxu0 0.0
  %1326 = vmatprep.subr.mxu0 0.0
  %1327 = vmatpush2.msra.mxu0 0.0
  %1328 = vmatprep.subr.mxu0 0.0
  %1329 = vmatpush2.msra.mxu0 0.0
  %1330 = vmatprep.subr.mxu0 0.0
  %1331 = vmatpush2.msra.mxu0 0.0
  %1332 = vmatprep.subr.mxu0 0.0
  %1333 = vmatpush2.msra.mxu0 0.0
  %1334 = vmatprep.mubr.f32.mxu0 0.0
  %1335 = vmatmul.mubr.f32.gmra.mxu0 %v41
  %v1336 = vpop.f32.mrf.mxu0
  %v1337 = vadd.f32 0.0, %v1336
  %v1338 = vpop.f32.mrf.mxu0
  %1339 = vmatprep.mubr.f32.mxu0 0.0
  %1340 = vmatmul.mubr.f32.gmra.mxu0 %v44
  %v1341 = vpop.f32.mrf.mxu0
  %v1342 = vadd.f32 0.0, %v1341
  %v1343 = vpop.f32.mrf.mxu0
  %1344 = vdwg.mxu0
  %v1346 = vsel %vm202, %v1262, 0
  %v1349 = vsel %vm202, %v1263, 0
  %1351 = vmatprep.subr.mxu0 0.0
  %1352 = vmatpush1.msra.mxu0 0.0
  %1353 = vmatprep.subr.mxu0 0.0
  %1354 = vmatpush1.msra.mxu0 0.0
  %1355 = vmatprep.subr.mxu0 0.0
  %1356 = vmatpush1.msra.mxu0 0.0
  %1357 = vmatprep.subr.mxu0 0.0
  %1358 = vmatpush1.msra.mxu0 0.0
  %1359 = vmatprep.subr.mxu0 0.0
  %1360 = vmatpush1.msra.mxu0 0.0
  %1361 = vmatprep.subr.mxu0 0.0
  %1362 = vmatpush1.msra.mxu0 0.0
  %1363 = vmatprep.subr.mxu0 0.0
  %1364 = vmatpush1.msra.mxu0 0.0
  %1365 = vmatprep.subr.mxu0 0.0
  %1366 = vmatpush1.msra.mxu0 0.0
  %1367 = vmatprep.subr.mxu0 0.0
  %1368 = vmatpush1.msra.mxu0 0.0
  %1369 = vmatprep.subr.mxu0 0.0
  %1370 = vmatpush1.msra.mxu0 0.0
  %1371 = vmatprep.subr.mxu0 0.0
  %1372 = vmatpush1.msra.mxu0 0.0
  %1373 = vmatprep.subr.mxu0 0.0
  %1374 = vmatpush1.msra.mxu0 0.0
  %1375 = vmatprep.subr.mxu0 0.0
  %1376 = vmatpush1.msra.mxu0 0.0
  %1377 = vmatprep.subr.mxu0 0.0
  %1378 = vmatpush1.msra.mxu0 0.0
  %1379 = vmatprep.subr.mxu0 0.0
  %1380 = vmatpush1.msra.mxu0 %v1342
  %1381 = vmatprep.subr.mxu0 0.0
  %1382 = vmatpush1.msra.mxu0 %v1337
  %1383 = vmatprep.subr.mxu0 0.0
  %1384 = vmatpush2.msra.mxu0 0.0
  %1385 = vmatprep.subr.mxu0 0.0
  %1386 = vmatpush2.msra.mxu0 0.0
  %1387 = vmatprep.subr.mxu0 0.0
  %1388 = vmatpush2.msra.mxu0 0.0
  %1389 = vmatprep.subr.mxu0 0.0
  %1390 = vmatpush2.msra.mxu0 0.0
  %1391 = vmatprep.subr.mxu0 0.0
  %1392 = vmatpush2.msra.mxu0 0.0
  %1393 = vmatprep.subr.mxu0 0.0
  %1394 = vmatpush2.msra.mxu0 0.0
  %1395 = vmatprep.subr.mxu0 0.0
  %1396 = vmatpush2.msra.mxu0 0.0
  %1397 = vmatprep.subr.mxu0 0.0
  %1398 = vmatpush2.msra.mxu0 0.0
  %1399 = vmatprep.subr.mxu0 0.0
  %1400 = vmatpush2.msra.mxu0 0.0
  %1401 = vmatprep.subr.mxu0 0.0
  %1402 = vmatpush2.msra.mxu0 0.0
  %1403 = vmatprep.subr.mxu0 0.0
  %1404 = vmatpush2.msra.mxu0 0.0
  %1405 = vmatprep.subr.mxu0 0.0
  %1406 = vmatpush2.msra.mxu0 0.0
  %1407 = vmatprep.subr.mxu0 0.0
  %1408 = vmatpush2.msra.mxu0 0.0
  %1409 = vmatprep.subr.mxu0 0.0
  %1410 = vmatpush2.msra.mxu0 0.0
  %1411 = vmatprep.subr.mxu0 0.0
  %1412 = vmatpush2.msra.mxu0 0.0
  %1413 = vmatprep.subr.mxu0 0.0
  %1414 = vmatpush2.msra.mxu0 0.0
  %1415 = vmatprep.mubr.f32.mxu0 0.0
  %1416 = vmatmul.mubr.f32.gmra.mxu0 %v1346
  %v1417 = vpop.f32.mrf.mxu0
  %v1418 = vadd.f32 0.0, %v1417
  %v1419 = vpop.f32.mrf.mxu0
  %1420 = vmatprep.mubr.f32.mxu0 0.0
  %1421 = vmatmul.mubr.f32.gmra.mxu0 %v1349
  %v1422 = vpop.f32.mrf.mxu0
  %v1423 = vadd.f32 0.0, %v1422
  %v1424 = vpop.f32.mrf.mxu0
  %1425 = vdwg.mxu0
  %v1426 = vadd.f32 %v1078, %v1418
  %v1427 = vadd.f32 %v1079, %v1423
  %v1428 = vlaneseq
  %v1429 = vshrl.u32 %v1428, 7
  %v1430 = vsub.s32 0, %v1429
  %v1431 = vrot.slane %v33, %v1430
  %v1432 = vadd.f32 %v1426, %v1431
  %v1433 = vadd.f32 %v1427, %v1431
  %v1434 = vadd.f32 %v29, %v1432
  %v1435 = vadd.f32 %v30, %v1433
  %vm1436 = vcmask 261120
  %v1437 = vsel %vm1436, %v1434, 0.0
  %1438 = vadd.xlane.f32.xlu0 %v1437
  %v1439 = vpop.xlane.xlu0 %1438
  %v1440 = vsel %vm1436, %v1435, 0.0
  %1441 = vadd.xlane.f32.xlu0 %v1440
  %v1442 = vpop.xlane.xlu0 %1441
  %v1443 = vrcp.pop 32.0
  %v1444 = vmul.f32 %v1439, %v1443
  %v1445 = vmul.f32 %v1442, %v1443
  %v1446 = vsub.f32 %v1434, %v1444
  %v1447 = vsub.f32 %v1435, %v1445
  %v1448 = vmul.f32 %v1446, %v1446
  %v1449 = vmul.f32 %v1447, %v1447
  %v1450 = vsel %vm1436, %v1448, 0.0
  %1451 = vadd.xlane.f32.xlu0 %v1450
  %v1452 = vpop.xlane.xlu0 %1451
  %v1453 = vsel %vm1436, %v1449, 0.0
  %1454 = vadd.xlane.f32.xlu0 %v1453
  %v1455 = vpop.xlane.xlu0 %1454
  %v1456 = vmul.f32 %v1452, %v1443
  %v1457 = vmul.f32 %v1455, %v1443
  %v1458 = vadd.f32 %v1456, 1e-05
  %v1459 = vadd.f32 %v1457, 1e-05
  %v1460 = vrsqrt.pop %v1458
  %v1461 = vrsqrt.pop %v1459
  %v1462 = vmul.f32 %v1446, %v1460
  %v1463 = vmul.f32 %v1447, %v1461
  %v1464 = vlaneseq
  %v1465 = vshrl.u32 %v1464, 7
  %v1466 = vsub.s32 1, %v1465
  %v1467 = vrot.slane %v33, %v1466
  %v1468 = vmul.f32 %v1462, %v1467
  %v1469 = vmul.f32 %v1463, %v1467
  %v1470 = vlaneseq
  %v1471 = vshrl.u32 %v1470, 7
  %v1472 = vsub.s32 2, %v1471
  %v1473 = vrot.slane %v33, %v1472
  %v1474 = vadd.f32 %v1468, %v1473
  %v1475 = vadd.f32 %v1469, %v1473
  %v1476 = vld [vmem:[%s4] sm:$0xff]
  %v1477 = vld [vmem:[%s4 + $0x8] sm:$0xff]
  %v1478 = vld [vmem:[%s4 + $0x10] sm:$0xff]
  %v1479 = vld [vmem:[%s4 + $0x18] sm:$0xff]
  %v1480 = vlaneseq
  %v1481 = vshrl.u32 %v1480, 7
  %v1482 = vsub.s32 3, %v1481
  %v1483 = vrot.slane %v33, %v1482
  %v1485 = vsel %vm1436, %v1474, 0
  %v1488 = vsel %vm1436, %v1475, 0
  %1490 = vmatprep.subr.mxu0 0.0
  %1491 = vmatpush1.msra.mxu0 0.0
  %1492 = vmatprep.subr.mxu0 0.0
  %1493 = vmatpush1.msra.mxu0 0.0
  %1494 = vmatprep.subr.mxu0 0.0
  %1495 = vmatpush1.msra.mxu0 0.0
  %1496 = vmatprep.subr.mxu0 0.0
  %1497 = vmatpush1.msra.mxu0 0.0
  %1498 = vmatprep.subr.mxu0 0.0
  %1499 = vmatpush1.msra.mxu0 0.0
  %1500 = vmatprep.subr.mxu0 0.0
  %1501 = vmatpush1.msra.mxu0 0.0
  %1502 = vmatprep.subr.mxu0 0.0
  %1503 = vmatpush1.msra.mxu0 0.0
  %1504 = vmatprep.subr.mxu0 0.0
  %1505 = vmatpush1.msra.mxu0 0.0
  %1506 = vmatprep.subr.mxu0 0.0
  %1507 = vmatpush1.msra.mxu0 0.0
  %1508 = vmatprep.subr.mxu0 0.0
  %1509 = vmatpush1.msra.mxu0 0.0
  %1510 = vmatprep.subr.mxu0 0.0
  %1511 = vmatpush1.msra.mxu0 0.0
  %1512 = vmatprep.subr.mxu0 0.0
  %1513 = vmatpush1.msra.mxu0 0.0
  %1514 = vmatprep.subr.mxu0 0.0
  %1515 = vmatpush1.msra.mxu0 %v1479
  %1516 = vmatprep.subr.mxu0 0.0
  %1517 = vmatpush1.msra.mxu0 %v1478
  %1518 = vmatprep.subr.mxu0 0.0
  %1519 = vmatpush1.msra.mxu0 %v1477
  %1520 = vmatprep.subr.mxu0 0.0
  %1521 = vmatpush1.msra.mxu0 %v1476
  %1522 = vmatprep.subr.mxu0 0.0
  %1523 = vmatpush2.msra.mxu0 0.0
  %1524 = vmatprep.subr.mxu0 0.0
  %1525 = vmatpush2.msra.mxu0 0.0
  %1526 = vmatprep.subr.mxu0 0.0
  %1527 = vmatpush2.msra.mxu0 0.0
  %1528 = vmatprep.subr.mxu0 0.0
  %1529 = vmatpush2.msra.mxu0 0.0
  %1530 = vmatprep.subr.mxu0 0.0
  %1531 = vmatpush2.msra.mxu0 0.0
  %1532 = vmatprep.subr.mxu0 0.0
  %1533 = vmatpush2.msra.mxu0 0.0
  %1534 = vmatprep.subr.mxu0 0.0
  %1535 = vmatpush2.msra.mxu0 0.0
  %1536 = vmatprep.subr.mxu0 0.0
  %1537 = vmatpush2.msra.mxu0 0.0
  %1538 = vmatprep.subr.mxu0 0.0
  %1539 = vmatpush2.msra.mxu0 0.0
  %1540 = vmatprep.subr.mxu0 0.0
  %1541 = vmatpush2.msra.mxu0 0.0
  %1542 = vmatprep.subr.mxu0 0.0
  %1543 = vmatpush2.msra.mxu0 0.0
  %1544 = vmatprep.subr.mxu0 0.0
  %1545 = vmatpush2.msra.mxu0 0.0
  %1546 = vmatprep.subr.mxu0 0.0
  %1547 = vmatpush2.msra.mxu0 0.0
  %1548 = vmatprep.subr.mxu0 0.0
  %1549 = vmatpush2.msra.mxu0 0.0
  %1550 = vmatprep.subr.mxu0 0.0
  %1551 = vmatpush2.msra.mxu0 0.0
  %1552 = vmatprep.subr.mxu0 0.0
  %1553 = vmatpush2.msra.mxu0 0.0
  %1554 = vmatprep.mubr.f32.mxu0 0.0
  %1555 = vmatmul.mubr.f32.gmra.mxu0 %v1485
  %v1556 = vpop.f32.mrf.mxu0
  %v1557 = vadd.f32 %v1483, %v1556
  %v1558 = vpop.f32.mrf.mxu0
  %1559 = vmatprep.mubr.f32.mxu0 0.0
  %1560 = vmatmul.mubr.f32.gmra.mxu0 %v1488
  %v1561 = vpop.f32.mrf.mxu0
  %v1562 = vadd.f32 %v1483, %v1561
  %v1563 = vpop.f32.mrf.mxu0
  %1564 = vdwg.mxu0
  %v1565 = vmax.f32 %v1557, 0.0
  %v1566 = vmax.f32 %v1562, 0.0
  %v1567 = vld [vmem:[%s5] sm:$0xff]
  %v1568 = vld [vmem:[%s5 + $0x8] sm:$0xff]
  %v1569 = vld [vmem:[%s5 + $0x10] sm:$0xff]
  %v1570 = vld [vmem:[%s5 + $0x18] sm:$0xff]
  %v1571 = vld [vmem:[%s5 + $0x20] sm:$0xff]
  %v1572 = vld [vmem:[%s5 + $0x28] sm:$0xff]
  %v1573 = vld [vmem:[%s5 + $0x30] sm:$0xff]
  %v1574 = vld [vmem:[%s5 + $0x38] sm:$0xff]
  %v1575 = vlaneseq
  %v1576 = vshrl.u32 %v1575, 7
  %v1577 = vsub.s32 4, %v1576
  %v1578 = vrot.slane %v33, %v1577
  %vm1579 = vcmask 523264
  %v1581 = vsel %vm1579, %v1565, 0
  %v1584 = vsel %vm1579, %v1566, 0
  %1586 = vmatprep.subr.mxu0 0.0
  %1587 = vmatpush1.msra.mxu0 0.0
  %1588 = vmatprep.subr.mxu0 0.0
  %1589 = vmatpush1.msra.mxu0 0.0
  %1590 = vmatprep.subr.mxu0 0.0
  %1591 = vmatpush1.msra.mxu0 0.0
  %1592 = vmatprep.subr.mxu0 0.0
  %1593 = vmatpush1.msra.mxu0 0.0
  %1594 = vmatprep.subr.mxu0 0.0
  %1595 = vmatpush1.msra.mxu0 0.0
  %1596 = vmatprep.subr.mxu0 0.0
  %1597 = vmatpush1.msra.mxu0 0.0
  %1598 = vmatprep.subr.mxu0 0.0
  %1599 = vmatpush1.msra.mxu0 0.0
  %1600 = vmatprep.subr.mxu0 0.0
  %1601 = vmatpush1.msra.mxu0 0.0
  %1602 = vmatprep.subr.mxu0 0.0
  %1603 = vmatpush1.msra.mxu0 %v1574
  %1604 = vmatprep.subr.mxu0 0.0
  %1605 = vmatpush1.msra.mxu0 %v1573
  %1606 = vmatprep.subr.mxu0 0.0
  %1607 = vmatpush1.msra.mxu0 %v1572
  %1608 = vmatprep.subr.mxu0 0.0
  %1609 = vmatpush1.msra.mxu0 %v1571
  %1610 = vmatprep.subr.mxu0 0.0
  %1611 = vmatpush1.msra.mxu0 %v1570
  %1612 = vmatprep.subr.mxu0 0.0
  %1613 = vmatpush1.msra.mxu0 %v1569
  %1614 = vmatprep.subr.mxu0 0.0
  %1615 = vmatpush1.msra.mxu0 %v1568
  %1616 = vmatprep.subr.mxu0 0.0
  %1617 = vmatpush1.msra.mxu0 %v1567
  %1618 = vmatprep.subr.mxu0 0.0
  %1619 = vmatpush2.msra.mxu0 0.0
  %1620 = vmatprep.subr.mxu0 0.0
  %1621 = vmatpush2.msra.mxu0 0.0
  %1622 = vmatprep.subr.mxu0 0.0
  %1623 = vmatpush2.msra.mxu0 0.0
  %1624 = vmatprep.subr.mxu0 0.0
  %1625 = vmatpush2.msra.mxu0 0.0
  %1626 = vmatprep.subr.mxu0 0.0
  %1627 = vmatpush2.msra.mxu0 0.0
  %1628 = vmatprep.subr.mxu0 0.0
  %1629 = vmatpush2.msra.mxu0 0.0
  %1630 = vmatprep.subr.mxu0 0.0
  %1631 = vmatpush2.msra.mxu0 0.0
  %1632 = vmatprep.subr.mxu0 0.0
  %1633 = vmatpush2.msra.mxu0 0.0
  %1634 = vmatprep.subr.mxu0 0.0
  %1635 = vmatpush2.msra.mxu0 0.0
  %1636 = vmatprep.subr.mxu0 0.0
  %1637 = vmatpush2.msra.mxu0 0.0
  %1638 = vmatprep.subr.mxu0 0.0
  %1639 = vmatpush2.msra.mxu0 0.0
  %1640 = vmatprep.subr.mxu0 0.0
  %1641 = vmatpush2.msra.mxu0 0.0
  %1642 = vmatprep.subr.mxu0 0.0
  %1643 = vmatpush2.msra.mxu0 0.0
  %1644 = vmatprep.subr.mxu0 0.0
  %1645 = vmatpush2.msra.mxu0 0.0
  %1646 = vmatprep.subr.mxu0 0.0
  %1647 = vmatpush2.msra.mxu0 0.0
  %1648 = vmatprep.subr.mxu0 0.0
  %1649 = vmatpush2.msra.mxu0 0.0
  %1650 = vmatprep.mubr.f32.mxu0 0.0
  %1651 = vmatmul.mubr.f32.gmra.mxu0 %v1581
  %v1652 = vpop.f32.mrf.mxu0
  %v1653 = vadd.f32 %v1578, %v1652
  %v1654 = vpop.f32.mrf.mxu0
  %1655 = vmatprep.mubr.f32.mxu0 0.0
  %1656 = vmatmul.mubr.f32.gmra.mxu0 %v1584
  %v1657 = vpop.f32.mrf.mxu0
  %v1658 = vadd.f32 %v1578, %v1657
  %v1659 = vpop.f32.mrf.mxu0
  %1660 = vdwg.mxu0
  %v1661 = vadd.f32 %v1474, %v1653
  %v1662 = vadd.f32 %v1475, %v1658
  %v1663 = vsel %vm1436, %v1661, 0.0
  %1664 = vadd.xlane.f32.xlu0 %v1663
  %v1665 = vpop.xlane.xlu0 %1664
  %v1666 = vsel %vm1436, %v1662, 0.0
  %1667 = vadd.xlane.f32.xlu0 %v1666
  %v1668 = vpop.xlane.xlu0 %1667
  %v1669 = vmul.f32 %v1665, %v1443
  %v1670 = vmul.f32 %v1668, %v1443
  %v1671 = vsub.f32 %v1661, %v1669
  %v1672 = vsub.f32 %v1662, %v1670
  %v1673 = vmul.f32 %v1671, %v1671
  %v1674 = vmul.f32 %v1672, %v1672
  %v1675 = vsel %vm1436, %v1673, 0.0
  %1676 = vadd.xlane.f32.xlu0 %v1675
  %v1677 = vpop.xlane.xlu0 %1676
  %v1678 = vsel %vm1436, %v1674, 0.0
  %1679 = vadd.xlane.f32.xlu0 %v1678
  %v1680 = vpop.xlane.xlu0 %1679
  %v1681 = vmul.f32 %v1677, %v1443
  %v1682 = vmul.f32 %v1680, %v1443
  %v1683 = vadd.f32 %v1681, 1e-05
  %v1684 = vadd.f32 %v1682, 1e-05
  %v1685 = vrsqrt.pop %v1683
  %v1686 = vrsqrt.pop %v1684
  %v1687 = vmul.f32 %v1671, %v1685
  %v1688 = vmul.f32 %v1672, %v1686
  %v1689 = vld [vmem:[%s6] sm:$0xff]
  %v1690 = vld [vmem:[%s6 + $0x8] sm:$0xff]
  %v1691 = vld [vmem:[%s6 + $0x10] sm:$0xff]
  %v1692 = vld [vmem:[%s6 + $0x18] sm:$0xff]
  %v1693 = vlaneseq
  %v1694 = vshrl.u32 %v1693, 7
  %v1695 = vsub.s32 5, %v1694
  %v1696 = vrot.slane %v33, %v1695
  %v1698 = vsel %vm1436, %v1687, 0
  %v1701 = vsel %vm1436, %v1688, 0
  %1703 = vmatprep.subr.mxu0 0.0
  %1704 = vmatpush1.msra.mxu0 0.0
  %1705 = vmatprep.subr.mxu0 0.0
  %1706 = vmatpush1.msra.mxu0 0.0
  %1707 = vmatprep.subr.mxu0 0.0
  %1708 = vmatpush1.msra.mxu0 0.0
  %1709 = vmatprep.subr.mxu0 0.0
  %1710 = vmatpush1.msra.mxu0 0.0
  %1711 = vmatprep.subr.mxu0 0.0
  %1712 = vmatpush1.msra.mxu0 0.0
  %1713 = vmatprep.subr.mxu0 0.0
  %1714 = vmatpush1.msra.mxu0 0.0
  %1715 = vmatprep.subr.mxu0 0.0
  %1716 = vmatpush1.msra.mxu0 0.0
  %1717 = vmatprep.subr.mxu0 0.0
  %1718 = vmatpush1.msra.mxu0 0.0
  %1719 = vmatprep.subr.mxu0 0.0
  %1720 = vmatpush1.msra.mxu0 0.0
  %1721 = vmatprep.subr.mxu0 0.0
  %1722 = vmatpush1.msra.mxu0 0.0
  %1723 = vmatprep.subr.mxu0 0.0
  %1724 = vmatpush1.msra.mxu0 0.0
  %1725 = vmatprep.subr.mxu0 0.0
  %1726 = vmatpush1.msra.mxu0 0.0
  %1727 = vmatprep.subr.mxu0 0.0
  %1728 = vmatpush1.msra.mxu0 %v1692
  %1729 = vmatprep.subr.mxu0 0.0
  %1730 = vmatpush1.msra.mxu0 %v1691
  %1731 = vmatprep.subr.mxu0 0.0
  %1732 = vmatpush1.msra.mxu0 %v1690
  %1733 = vmatprep.subr.mxu0 0.0
  %1734 = vmatpush1.msra.mxu0 %v1689
  %1735 = vmatprep.subr.mxu0 0.0
  %1736 = vmatpush2.msra.mxu0 0.0
  %1737 = vmatprep.subr.mxu0 0.0
  %1738 = vmatpush2.msra.mxu0 0.0
  %1739 = vmatprep.subr.mxu0 0.0
  %1740 = vmatpush2.msra.mxu0 0.0
  %1741 = vmatprep.subr.mxu0 0.0
  %1742 = vmatpush2.msra.mxu0 0.0
  %1743 = vmatprep.subr.mxu0 0.0
  %1744 = vmatpush2.msra.mxu0 0.0
  %1745 = vmatprep.subr.mxu0 0.0
  %1746 = vmatpush2.msra.mxu0 0.0
  %1747 = vmatprep.subr.mxu0 0.0
  %1748 = vmatpush2.msra.mxu0 0.0
  %1749 = vmatprep.subr.mxu0 0.0
  %1750 = vmatpush2.msra.mxu0 0.0
  %1751 = vmatprep.subr.mxu0 0.0
  %1752 = vmatpush2.msra.mxu0 0.0
  %1753 = vmatprep.subr.mxu0 0.0
  %1754 = vmatpush2.msra.mxu0 0.0
  %1755 = vmatprep.subr.mxu0 0.0
  %1756 = vmatpush2.msra.mxu0 0.0
  %1757 = vmatprep.subr.mxu0 0.0
  %1758 = vmatpush2.msra.mxu0 0.0
  %1759 = vmatprep.subr.mxu0 0.0
  %1760 = vmatpush2.msra.mxu0 0.0
  %1761 = vmatprep.subr.mxu0 0.0
  %1762 = vmatpush2.msra.mxu0 0.0
  %1763 = vmatprep.subr.mxu0 0.0
  %1764 = vmatpush2.msra.mxu0 0.0
  %1765 = vmatprep.subr.mxu0 0.0
  %1766 = vmatpush2.msra.mxu0 0.0
  %1767 = vmatprep.mubr.f32.mxu0 0.0
  %1768 = vmatmul.mubr.f32.gmra.mxu0 %v1698
  %v1769 = vpop.f32.mrf.mxu0
  %v1770 = vadd.f32 %v1696, %v1769
  %v1771 = vpop.f32.mrf.mxu0
  %1772 = vmatprep.mubr.f32.mxu0 0.0
  %1773 = vmatmul.mubr.f32.gmra.mxu0 %v1701
  %v1774 = vpop.f32.mrf.mxu0
  %v1775 = vadd.f32 %v1696, %v1774
  %v1776 = vpop.f32.mrf.mxu0
  %1777 = vdwg.mxu0
  %1778 = vst [vmem:[%s8] sm:$0xff] %v1770
  %1779 = vst [vmem:[%s8 + $0x8] sm:$0xff] %v1775
  // Predicated region
  $region34: #{transformer_forward.1} parent=0 // pred_check
    _
  $region35: #{transformer_forward.1} parent=0 // pred_check_branch
    %1781 = sbr.rel (0) target = $region37
  $region36: #{transformer_forward.1} parent=0 // pred_region
    _
  $region37: #{transformer_forward.1} parent=0 // pred_fallthru
    _
  // Predicated region
  $region38: #{transformer_forward.1} parent=0 // pred_check
    _
  $region39: #{transformer_forward.1} parent=0 // pred_check_branch
    %1783 = sbr.rel (0) target = $region41
  $region40: #{transformer_forward.1} parent=0 // pred_region
    _
  $region41: #{transformer_forward.1} parent=0 // pred_fallthru
    _

</llo_original>
